<compile_context>
chip_gen: v5e
topology: v5e:2x2
jax: 0.10.0
libtpu: 0.0.40
codegen_flags: <defaults>
</compile_context>

<pallas_src>
import jax
import jax.numpy as jnp
from jax.experimental import pallas as pl
from jax.experimental.pallas import tpu as pltpu

# ------------------------- hyper-parameters -------------------------
INPUT_DIM = 6      # V  (num variables)
HIDDEN_DIM = 6     # H  (must be 6: fc_v = Linear(6, H) consumes the H axis)
TIME = 6           # T  (must equal t=6, the last dim of self.weights)
NUM_LAYERS = 1
RANK = 1
RATIO = 0.5
BATCH = 2

_LANES = 128

# ---- parameter slab layout (rows, all pieces at lane offset 0, 8-aligned) ----
_PR_MG = 0      # m_graph          (T*V, V*H) = (36, 36)
_PR_BF = 40     # biases flattened (1, V*H)   = (1, 36)
_PR_W2B = 48    # w2_blk           (V*H, V)   = (36, 6)   folded fc_v.fc graph head
_PR_FCW = 88    # fcw_blk          (T*H, T)   = (36, 6)   folded fc lstm head
_PR_WIH = 128   # 4 gate blocks of 8 rows: W_ih_g^T (V, H), PyTorch order i,f,g,o
_PR_WHH = 160   # 4 gate blocks of 8 rows: W_hh_g^T (H, H)
_PR_BG = 192    # 4 rows: (b_ih + b_hh) per gate, (1, H) each
_PR_ADJ = 200   # adjacency logits weight1_var @ weight2_var (V, V)
_P_ROWS = 208

# ---- data slab layout ----
_DR_XL = 0      # x_lstm  (T*2B, V) = (24, 6)  time-major [x ; x_fft]
_DR_XG = 24     # x_graph (B, T*V)  = (2, 36)
_D_ROWS = 32

# ---- output slab layout ----
_OR_HS = 0      # hidden states (2B, T*H) = (4, 36): rows 0..B-1 = x, B..2B-1 = fft
_OR_LOG = 8     # sigmoid(fc(...)) logits (B, T) = (2, 6)
_OR_ADJ = 16    # adj_var_weight (V, V) = (6, 6)
_O_ROWS = 24

_VMEM = pl.BlockSpec(memory_space=pltpu.MemorySpace.VMEM)
_SMEM = pl.BlockSpec(memory_space=pltpu.MemorySpace.SMEM)


# ============================ fused Pallas kernel ============================

def _vignn_fused_kernel(head_bias_ref,   # SMEM (1,)   : fc_v.bias.fc.w + fc.b
                        p_ref,           # VMEM (208,128): packed parameter slab
                        d_ref,           # VMEM (32,128) : packed activation slab
                        out_ref):        # VMEM (24,128) : packed output slab
    B, V, H, T = BATCH, INPUT_DIM, HIDDEN_DIM, TIME
    BB = 2 * B
    VH, TV, TH = V * H, T * V, T * H

    # Zero the output slab once (full-width unmasked stores); the region writes
    # below overwrite their own parts, so the single writeback carries no garbage.
    out_ref[...] = jnp.zeros_like(out_ref)

    # ---------------- graph / adjacency path (MXU matmuls) ----------------
    # einsum('bvt,vht->bvh') + bias -> relu, as one (B,T*V)@(T*V,V*H) matmul
    # against the precomputed block-diagonal weight.  (For large B, cast these
    # matmul operands to bf16 with preferred_element_type=f32.)
    xg = d_ref[_DR_XG:_DR_XG + B, 0:TV]                            # (B, T*V)
    mg = p_ref[_PR_MG:_PR_MG + TV, 0:VH]                           # (T*V, V*H)
    bflat = p_ref[_PR_BF:_PR_BF + 1, 0:VH]                         # (1, V*H)
    x_var = jnp.maximum(
        jnp.dot(xg, mg, preferred_element_type=jnp.float32) + bflat, 0.0)

    # adjacency: softmax(weight1_var @ weight2_var, dim=1); outer product is a
    # pure-parameter matrix precomputed into the slab.
    adj_logits = p_ref[_PR_ADJ:_PR_ADJ + V, 0:V]                   # (V, V)
    a = adj_logits - jnp.max(adj_logits, axis=1, keepdims=True)
    e = jnp.exp(a)
    adj = e / jnp.sum(e, axis=1, keepdims=True)
    row = jax.lax.broadcasted_iota(jnp.int32, (V, V), 0)
    col = jax.lax.broadcasted_iota(jnp.int32, (V, V), 1)
    api = adj + (row == col).astype(jnp.float32)                   # adj + I

    # fc(fc_v((adj+I) @ x_var)) with fc_v/fc folded (both linear, dropout p=0):
    #   t_mat[b,k] = sum_h x_var[b,k,h] * (fc_v.W^T @ fc.w)[h]
    #   go_fc[b,v] = sum_k (adj+I)[v,k] * t_mat[b,k]   (contract api on axis 1,
    #   no explicit transpose materialized).
    w2blk = p_ref[_PR_W2B:_PR_W2B + VH, 0:V]                       # (V*H, V)
    t_mat = jnp.dot(x_var, w2blk, preferred_element_type=jnp.float32)   # (B, V)
    go_fc = jax.lax.dot_general(t_mat, api, (((1,), (1,)), ((), ())),
                                preferred_element_type=jnp.float32)     # (B, V)

    # ---------------- shared LSTM over [x ; x_fft] (weight sharing) ----------------
    xl = d_ref[_DR_XL:_DR_XL + T * BB, 0:V]                        # (T*2B, V) time-major

    # Hoisted per-gate input projections (PyTorch gate order i,f,g,o).  Keeping
    # the gates as four separate (T*2B, H) arrays makes every per-step gate
    # extraction a sublane slice and all gate math lane-aligned with h/c
    # (lanes 0..H-1): no cross-lane rotations inside the recurrence.
    gx, whh = [], []
    for g in range(4):
        wih_g = p_ref[_PR_WIH + 8 * g:_PR_WIH + 8 * g + V, 0:H]    # (V, H)
        b_g = p_ref[_PR_BG + g:_PR_BG + g + 1, 0:H]                # (1, H)
        gx.append(jnp.dot(xl, wih_g, preferred_element_type=jnp.float32) + b_g)
        whh.append(p_ref[_PR_WHH + 8 * g:_PR_WHH + 8 * g + H, 0:H])  # (H, H)

    hs_steps = []
    h = jnp.zeros((BB, H), jnp.float32)
    c = jnp.zeros((BB, H), jnp.float32)
    for t in range(T):                                             # static unroll, T=6
        r0 = t * BB
        gi = gx[0][r0:r0 + BB, :]
        gf = gx[1][r0:r0 + BB, :]
        gg = gx[2][r0:r0 + BB, :]
        go = gx[3][r0:r0 + BB, :]
        if t > 0:                                                  # h0 = c0 = 0
            # Four tiny per-gate (2B,H)@(H,H) matmuls: lane-aligned results, no
            # lane-offset gate slicing on the serialized h->h chain.
            gi = gi + jnp.dot(h, whh[0], preferred_element_type=jnp.float32)
            gf = gf + jnp.dot(h, whh[1], preferred_element_type=jnp.float32)
            gg = gg + jnp.dot(h, whh[2], preferred_element_type=jnp.float32)
            go = go + jnp.dot(h, whh[3], preferred_element_type=jnp.float32)
        i_g = jax.nn.sigmoid(gi)
        f_g = jax.nn.sigmoid(gf)
        g_g = jnp.tanh(gg)
        o_g = jax.nn.sigmoid(go)
        c = f_g * c + i_g * g_g
        h = o_g * jnp.tanh(c)
        hs_steps.append(h)                                         # stays in registers

    # Pack hidden states once after the loop (register-resident; no per-step
    # masked stores and no store->load through VMEM for the head matmul).
    hs_all = jnp.concatenate(hs_steps, axis=1)                     # (2B, T*H)
    out_ref[_OR_HS:_OR_HS + BB, 0:TH] = hs_all

    # ---------------- head: sigmoid(fc(x_var_fft + fc_v(graph_out))) ----------------
    fcwblk = p_ref[_PR_FCW:_PR_FCW + TH, 0:T]                      # (T*H, T)
    hfc = jnp.dot(hs_all[B:BB, :], fcwblk,
                  preferred_element_type=jnp.float32)              # (B, T) fft stream
    logits = hfc + go_fc + head_bias_ref[0]
    out_ref[_OR_LOG:_OR_LOG + B, 0:T] = jax.nn.sigmoid(logits)
    out_ref[_OR_ADJ:_OR_ADJ + V, 0:V] = adj


# ============================ freq_mix (plain JAX glue) ============================
# TODO(synk): FFT / descending argsort / random permutation have no Pallas TPU
# primitive; this randomized augmentation stays in plain JAX (deterministic key).
# Matches the PyTorch freq_mix literally: dominant_mask = (argsort indices > rank),
# freal/fimag = where(m, x2_f, x_f).
def freq_mix_jax(key, x, rank=1, rate=0.5, dim=1):
    k_mask, k_perm = jax.random.split(key)
    x_f = jnp.fft.fft(x, axis=dim)
    m = jax.random.uniform(k_mask, x_f.shape) < rate
    amp = jnp.abs(x_f)
    index = jnp.argsort(-amp, axis=dim)            # descending-sort indices
    dominant_mask = index > rank
    m = jnp.logical_and(m, dominant_mask)
    b_idx = jax.random.permutation(k_perm, x.shape[0])
    x2_f = jnp.fft.fft(x[b_idx], axis=dim)
    freal = jnp.where(m, x2_f.real, x_f.real)      # masked_fill + add(fill on ~m)
    fimag = jnp.where(m, x2_f.imag, x_f.imag)
    return jnp.abs(jnp.fft.ifft(freal + 1j * fimag, axis=dim)).astype(x.dtype)


# ============================ params & prepare ============================

def init_params(key):
    V, H, T = INPUT_DIM, HIDDEN_DIM, TIME
    ks = jax.random.split(key, 10)

    def xavier_uniform(k, shape, fan_in, fan_out):
        bound = (6.0 / (fan_in + fan_out)) ** 0.5
        return jax.random.uniform(k, shape, jnp.float32, -bound, bound)

    def xavier_normal(k, shape, fan_in, fan_out):
        std = (2.0 / (fan_in + fan_out)) ** 0.5
        return std * jax.random.normal(k, shape, jnp.float32)

    u_lstm = 1.0 / (H ** 0.5)
    u_fcv = 1.0 / (6.0 ** 0.5)
    return dict(
        weight1_var=jax.random.normal(ks[0], (V, 1), jnp.float32),
        weight2_var=jax.random.normal(ks[1], (1, V), jnp.float32),
        weights=xavier_uniform(ks[2], (V, H, T), T, H),           # (V, H, t)
        biases=jnp.zeros((V, H), jnp.float32),
        fc_w=xavier_normal(ks[3], (1, H), H, 1),
        fc_b=jnp.zeros((1,), jnp.float32),
        fcv_w=jax.random.uniform(ks[4], (H, 6), jnp.float32, -u_fcv, u_fcv),
        fcv_b=jax.random.uniform(ks[5], (H,), jnp.float32, -u_fcv, u_fcv),
        lstm_w_ih=jax.random.uniform(ks[6], (4 * H, V), jnp.float32, -u_lstm, u_lstm),
        lstm_w_hh=jax.random.uniform(ks[7], (4 * H, H), jnp.float32, -u_lstm, u_lstm),
        lstm_b_ih=jax.random.uniform(ks[8], (4 * H,), jnp.float32, -u_lstm, u_lstm),
        lstm_b_hh=jax.random.uniform(ks[9], (4 * H,), jnp.float32, -u_lstm, u_lstm),
    )


def prepare_kernel_params(p):
    """One-time repack of PyTorch-layout params into ONE kernel-ready 128-lane
    VMEM slab (+ a folded head-bias scalar for SMEM): block-diagonal einsum
    weights, folded fc/fc_v head weights, transposed per-gate LSTM weights,
    combined gate biases, and the adjacency-logit outer product."""
    V, H, T = INPUT_DIM, HIDDEN_DIM, TIME
    eye_v = jnp.eye(V, dtype=jnp.float32)
    eye_t = jnp.eye(T, dtype=jnp.float32)
    fc_w = p["fc_w"][0]                                           # (H,)

    # einsum('bvt,vht->bvh') as (B,T*V) @ M with M[(t,v),(w,h)] = W[v,h,t]*d(v,w)
    m_graph = jnp.einsum("vht,vw->tvwh", p["weights"], eye_v).reshape(T * V, V * H)
    b_flat = p["biases"].reshape(1, V * H)

    # fold fc_v and fc (both linear, dropout p=0) into the graph / lstm heads
    wfcv_fc = p["fcv_w"].T @ fc_w                                 # (6,)
    w2_blk = jnp.einsum("vk,h->vhk", eye_v, wfcv_fc).reshape(V * H, V)
    fcw_blk = jnp.einsum("ts,h->ths", eye_t, fc_w).reshape(T * H, T)
    head_bias = (jnp.dot(p["fcv_b"], fc_w) + p["fc_b"][0]).reshape(1)

    adj_logits = p["weight1_var"] @ p["weight2_var"]              # (V, V)

    slab = jnp.zeros((_P_ROWS, _LANES), jnp.float32)
    slab = slab.at[_PR_MG:_PR_MG + T * V, :V * H].set(m_graph)
    slab = slab.at[_PR_BF:_PR_BF + 1, :V * H].set(b_flat)
    slab = slab.at[_PR_W2B:_PR_W2B + V * H, :V].set(w2_blk)
    slab = slab.at[_PR_FCW:_PR_FCW + T * H, :T].set(fcw_blk)
    b_comb = p["lstm_b_ih"] + p["lstm_b_hh"]
    for g in range(4):                                            # PyTorch gate order i,f,g,o
        wih_g = p["lstm_w_ih"][g * H:(g + 1) * H, :].T            # (V, H)
        whh_g = p["lstm_w_hh"][g * H:(g + 1) * H, :].T            # (H, H)
        b_g = b_comb[g * H:(g + 1) * H].reshape(1, H)
        slab = slab.at[_PR_WIH + 8 * g:_PR_WIH + 8 * g + V, :H].set(wih_g)
        slab = slab.at[_PR_WHH + 8 * g:_PR_WHH + 8 * g + H, :H].set(whh_g)
        slab = slab.at[_PR_BG + g:_PR_BG + g + 1, :H].set(b_g)
    slab = slab.at[_PR_ADJ:_PR_ADJ + V, :V].set(adj_logits)

    return dict(pslab=slab, head_bias=head_bias)


# ============================ forward ============================

@jax.jit
def vignn_tcl_forward(kparams, x, mix_key):
    # x: (B, T, V) float32.  For many independent forwards, batch them into a
    # larger B (and add a "parallel" batch grid axis for v7x's 2nd TensorCore)
    # rather than tuning the per-call body further.
    B, T, V = x.shape
    H = HIDDEN_DIM

    x_flip = jnp.flip(x, axis=1)                  # torch.flip(x, [1])
    x_fft = freq_mix_jax(mix_key, x_flip, rank=RANK, rate=RATIO, dim=1)

    # layout prep outside the kernel (tiny XLA ops): one packed activation slab.
    x_graph = x_flip.reshape(B, T * V)            # rows match m_graph's (t,v) flat index
    x_lstm = jnp.transpose(jnp.concatenate([x_flip, x_fft], axis=0),
                           (1, 0, 2)).reshape(T * 2 * B, V)        # time-major [x ; x_fft]
    dslab = jnp.zeros((_D_ROWS, _LANES), jnp.float32)
    dslab = dslab.at[_DR_XL:_DR_XL + T * 2 * B, :V].set(x_lstm)
    dslab = dslab.at[_DR_XG:_DR_XG + B, :T * V].set(x_graph)

    out = pl.pallas_call(
        _vignn_fused_kernel,
        out_shape=jax.ShapeDtypeStruct((_O_ROWS, _LANES), jnp.float32),
        in_specs=[_SMEM, _VMEM, _VMEM],           # 3 prologue DMAs total
        out_specs=_VMEM,                          # 1 writeback DMA total
    )(kparams["head_bias"], kparams["pslab"], dslab)

    # unpack the single output slab in the wrapper
    hs = out[_OR_HS:_OR_HS + 2 * B, :T * H]       # (2B, T*H): rows [x ; x_fft]
    logit_sig = out[_OR_LOG:_OR_LOG + B, :T]      # (B, T)
    adj = out[_OR_ADJ:_OR_ADJ + V, :V]            # (V, V)

    x_var_t = hs[:B, (T - 1) * H:T * H]           # lstm(x) last timestep hidden, (B, H)
    x_var_fft = hs[B:].reshape(B, T, H)           # lstm(x_fft) full sequence
    lstm_out = logit_sig.reshape(B, T, 1)
    return lstm_out, x_var_t, x_var_fft, adj


# ============================ main ============================

if __name__ == "__main__":
    key = jax.random.PRNGKey(0)
    k_param, k_x, k_mix = jax.random.split(key, 3)

    params = init_params(k_param)
    kparams = prepare_kernel_params(params)       # one-time repack (not per forward)
    x = jax.random.normal(k_x, (BATCH, TIME, INPUT_DIM), jnp.float32)

    outs = vignn_tcl_forward(kparams, x, k_mix)
    outs = jax.block_until_ready(outs)

    lstm_out, x_var_t, x_var_fft, adj_var_weight = outs
    assert lstm_out.shape == (BATCH, TIME, 1)
    assert x_var_t.shape == (BATCH, HIDDEN_DIM)
    assert x_var_fft.shape == (BATCH, TIME, HIDDEN_DIM)
    assert adj_var_weight.shape == (INPUT_DIM, INPUT_DIM)
    assert bool(jnp.all(jnp.isfinite(lstm_out)))
    assert bool(jnp.all(jnp.isfinite(x_var_t)))
    assert bool(jnp.all(jnp.isfinite(x_var_fft)))
    assert bool(jnp.all(jnp.isfinite(adj_var_weight)))
    print("KERNEL_OK")
</pallas_src>

<mosaic_0001>
module attributes {stable_mosaic.version = 11 : i64} {
  func.func @_vignn_fused_kernel(%arg0: memref<1xf32, #tpu.memory_space<smem>>, %arg1: memref<208x128xf32, #tpu.memory_space<vmem>>, %arg2: memref<32x128xf32, #tpu.memory_space<vmem>>, %arg3: memref<24x128xf32, #tpu.memory_space<vmem>>) attributes {dimension_semantics = [], scalar_prefetch = 0 : i64, scratch_operands = 0 : i64, tpu.core_type = #tpu.core_type<tc>} {
    %cst = arith.constant 0.000000e+00 : f32
    %0 = vector.broadcast %cst : f32 to vector<24x128xf32>
    %c0 = arith.constant 0 : index
    %c0_0 = arith.constant 0 : index
    %1 = vector.load %arg3[%c0, %c0_0] : memref<24x128xf32, #tpu.memory_space<vmem>>, vector<24x128xf32>
    tpu.vector_store %arg3[%c0, %c0_0], %0 {strides = array<i32>} : memref<24x128xf32, #tpu.memory_space<vmem>>, vector<24x128xf32>,
    %c24 = arith.constant 24 : index
    %c0_1 = arith.constant 0 : index
    %2 = vector.load %arg2[%c24, %c0_1] : memref<32x128xf32, #tpu.memory_space<vmem>>, vector<2x36xf32>
    %c0_2 = arith.constant 0 : index
    %c0_3 = arith.constant 0 : index
    %3 = vector.load %arg1[%c0_2, %c0_3] : memref<208x128xf32, #tpu.memory_space<vmem>>, vector<36x36xf32>
    %c40 = arith.constant 40 : index
    %c0_4 = arith.constant 0 : index
    %4 = vector.load %arg1[%c40, %c0_4] : memref<208x128xf32, #tpu.memory_space<vmem>>, vector<1x36xf32>
    %cst_5 = arith.constant dense<0.000000e+00> : vector<2x36xf32>
    %5 = tpu.matmul %2, %3, %cst_5 {dimension_numbers = #tpu.dot_dimension_numbers<[1], [0], [0], [1], [0, 0, 1, 1], [], []>} : vector<2x36xf32>, vector<36x36xf32>, vector<2x36xf32> -> vector<2x36xf32>
    %6 = vector.broadcast %4 : vector<1x36xf32> to vector<2x36xf32>
    %7 = arith.addf %5, %6 : vector<2x36xf32>
    %cst_6 = arith.constant 0.000000e+00 : f32
    %8 = vector.broadcast %cst_6 : f32 to vector<2x36xf32>
    %9 = arith.maximumf %7, %8 : vector<2x36xf32>
    %c200 = arith.constant 200 : index
    %c0_7 = arith.constant 0 : index
    %10 = vector.load %arg1[%c200, %c0_7] : memref<208x128xf32, #tpu.memory_space<vmem>>, vector<6x6xf32>
    %cst_8 = arith.constant dense<0xFF800000> : vector<6xf32>
    %11 = vector.multi_reduction <maximumf>, %10, %cst_8 [1] : vector<6x6xf32> to vector<6xf32>
    %12 = vector.shape_cast %11 : vector<6xf32> to vector<6x1xf32>
    %13 = vector.broadcast %12 : vector<6x1xf32> to vector<6x6xf32>
    %14 = arith.subf %10, %13 : vector<6x6xf32>
    %15 = math.exp %14 : vector<6x6xf32>
    %cst_9 = arith.constant dense<0.000000e+00> : vector<6xf32>
    %16 = vector.multi_reduction <add>, %15, %cst_9 [1] : vector<6x6xf32> to vector<6xf32>
    %17 = vector.shape_cast %16 : vector<6xf32> to vector<6x1xf32>
    %18 = vector.broadcast %17 : vector<6x1xf32> to vector<6x6xf32>
    %19 = arith.divf %15, %18 : vector<6x6xf32>
    %20 = tpu.iota {dimensions = array<i32: 0>} : vector<6x6xi32>
    %21 = tpu.iota {dimensions = array<i32: 1>} : vector<6x6xi32>
    %22 = arith.cmpi eq, %20, %21 : vector<6x6xi32>
    %23 = arith.extui %22 : vector<6x6xi1> to vector<6x6xi32>
    %24 = arith.sitofp %23 : vector<6x6xi32> to vector<6x6xf32>
    %25 = arith.addf %19, %24 : vector<6x6xf32>
    %c48 = arith.constant 48 : index
    %c0_10 = arith.constant 0 : index
    %26 = vector.load %arg1[%c48, %c0_10] : memref<208x128xf32, #tpu.memory_space<vmem>>, vector<36x6xf32>
    %cst_11 = arith.constant dense<0.000000e+00> : vector<2x6xf32>
    %27 = tpu.matmul %9, %26, %cst_11 {dimension_numbers = #tpu.dot_dimension_numbers<[1], [0], [0], [1], [0, 0, 1, 1], [], []>} : vector<2x36xf32>, vector<36x6xf32>, vector<2x6xf32> -> vector<2x6xf32>
    %cst_12 = arith.constant dense<0.000000e+00> : vector<2x6xf32>
    %28 = tpu.matmul %27, %25, %cst_12 {dimension_numbers = #tpu.dot_dimension_numbers<[1], [1], [0], [0], [0, 0, 1, 0], [], []>} : vector<2x6xf32>, vector<6x6xf32>, vector<2x6xf32> -> vector<2x6xf32>
    %c0_13 = arith.constant 0 : index
    %c0_14 = arith.constant 0 : index
    %29 = vector.load %arg2[%c0_13, %c0_14] : memref<32x128xf32, #tpu.memory_space<vmem>>, vector<24x6xf32>
    %c128 = arith.constant 128 : index
    %c0_15 = arith.constant 0 : index
    %30 = vector.load %arg1[%c128, %c0_15] : memref<208x128xf32, #tpu.memory_space<vmem>>, vector<6x6xf32>
    %c192 = arith.constant 192 : index
    %c0_16 = arith.constant 0 : index
    %31 = vector.load %arg1[%c192, %c0_16] : memref<208x128xf32, #tpu.memory_space<vmem>>, vector<1x6xf32>
    %cst_17 = arith.constant dense<0.000000e+00> : vector<24x6xf32>
    %32 = tpu.matmul %29, %30, %cst_17 {dimension_numbers = #tpu.dot_dimension_numbers<[1], [0], [0], [1], [0, 0, 1, 1], [], []>} : vector<24x6xf32>, vector<6x6xf32>, vector<24x6xf32> -> vector<24x6xf32>
    %33 = vector.broadcast %31 : vector<1x6xf32> to vector<24x6xf32>
    %34 = arith.addf %32, %33 : vector<24x6xf32>
    %c160 = arith.constant 160 : index
    %c0_18 = arith.constant 0 : index
    %35 = vector.load %arg1[%c160, %c0_18] : memref<208x128xf32, #tpu.memory_space<vmem>>, vector<6x6xf32>
    %c136 = arith.constant 136 : index
    %c0_19 = arith.constant 0 : index
    %36 = vector.load %arg1[%c136, %c0_19] : memref<208x128xf32, #tpu.memory_space<vmem>>, vector<6x6xf32>
    %c193 = arith.constant 193 : index
    %c0_20 = arith.constant 0 : index
    %37 = vector.load %arg1[%c193, %c0_20] : memref<208x128xf32, #tpu.memory_space<vmem>>, vector<1x6xf32>
    %cst_21 = arith.constant dense<0.000000e+00> : vector<24x6xf32>
    %38 = tpu.matmul %29, %36, %cst_21 {dimension_numbers = #tpu.dot_dimension_numbers<[1], [0], [0], [1], [0, 0, 1, 1], [], []>} : vector<24x6xf32>, vector<6x6xf32>, vector<24x6xf32> -> vector<24x6xf32>
    %39 = vector.broadcast %37 : vector<1x6xf32> to vector<24x6xf32>
    %40 = arith.addf %38, %39 : vector<24x6xf32>
    %c168 = arith.constant 168 : index
    %c0_22 = arith.constant 0 : index
    %41 = vector.load %arg1[%c168, %c0_22] : memref<208x128xf32, #tpu.memory_space<vmem>>, vector<6x6xf32>
    %c144 = arith.constant 144 : index
    %c0_23 = arith.constant 0 : index
    %42 = vector.load %arg1[%c144, %c0_23] : memref<208x128xf32, #tpu.memory_space<vmem>>, vector<6x6xf32>
    %c194 = arith.constant 194 : index
    %c0_24 = arith.constant 0 : index
    %43 = vector.load %arg1[%c194, %c0_24] : memref<208x128xf32, #tpu.memory_space<vmem>>, vector<1x6xf32>
    %cst_25 = arith.constant dense<0.000000e+00> : vector<24x6xf32>
    %44 = tpu.matmul %29, %42, %cst_25 {dimension_numbers = #tpu.dot_dimension_numbers<[1], [0], [0], [1], [0, 0, 1, 1], [], []>} : vector<24x6xf32>, vector<6x6xf32>, vector<24x6xf32> -> vector<24x6xf32>
    %45 = vector.broadcast %43 : vector<1x6xf32> to vector<24x6xf32>
    %46 = arith.addf %44, %45 : vector<24x6xf32>
    %c176 = arith.constant 176 : index
    %c0_26 = arith.constant 0 : index
    %47 = vector.load %arg1[%c176, %c0_26] : memref<208x128xf32, #tpu.memory_space<vmem>>, vector<6x6xf32>
    %c152 = arith.constant 152 : index
    %c0_27 = arith.constant 0 : index
    %48 = vector.load %arg1[%c152, %c0_27] : memref<208x128xf32, #tpu.memory_space<vmem>>, vector<6x6xf32>
    %c195 = arith.constant 195 : index
    %c0_28 = arith.constant 0 : index
    %49 = vector.load %arg1[%c195, %c0_28] : memref<208x128xf32, #tpu.memory_space<vmem>>, vector<1x6xf32>
    %cst_29 = arith.constant dense<0.000000e+00> : vector<24x6xf32>
    %50 = tpu.matmul %29, %48, %cst_29 {dimension_numbers = #tpu.dot_dimension_numbers<[1], [0], [0], [1], [0, 0, 1, 1], [], []>} : vector<24x6xf32>, vector<6x6xf32>, vector<24x6xf32> -> vector<24x6xf32>
    %51 = vector.broadcast %49 : vector<1x6xf32> to vector<24x6xf32>
    %52 = arith.addf %50, %51 : vector<24x6xf32>
    %c184 = arith.constant 184 : index
    %c0_30 = arith.constant 0 : index
    %53 = vector.load %arg1[%c184, %c0_30] : memref<208x128xf32, #tpu.memory_space<vmem>>, vector<6x6xf32>
    %cst_31 = arith.constant 0.000000e+00 : f32
    %54 = vector.broadcast %cst_31 : f32 to vector<4x6xf32>
    %55 = vector.extract_strided_slice %34 {offsets = [0, 0], sizes = [4, 6], strides = [1, 1]} : vector<24x6xf32> to vector<4x6xf32>
    %56 = vector.extract_strided_slice %40 {offsets = [0, 0], sizes = [4, 6], strides = [1, 1]} : vector<24x6xf32> to vector<4x6xf32>
    %57 = vector.extract_strided_slice %46 {offsets = [0, 0], sizes = [4, 6], strides = [1, 1]} : vector<24x6xf32> to vector<4x6xf32>
    %58 = vector.extract_strided_slice %52 {offsets = [0, 0], sizes = [4, 6], strides = [1, 1]} : vector<24x6xf32> to vector<4x6xf32>
    %59 = arith.negf %55 : vector<4x6xf32>
    %60 = math.exp %59 : vector<4x6xf32>
    %cst_32 = arith.constant 1.000000e+00 : f32
    %61 = vector.broadcast %cst_32 : f32 to vector<4x6xf32>
    %62 = arith.addf %61, %60 : vector<4x6xf32>
    %63 = arith.divf %61, %62 : vector<4x6xf32>
    %64 = arith.negf %56 : vector<4x6xf32>
    %65 = math.exp %64 : vector<4x6xf32>
    %cst_33 = arith.constant 1.000000e+00 : f32
    %66 = vector.broadcast %cst_33 : f32 to vector<4x6xf32>
    %67 = arith.addf %66, %65 : vector<4x6xf32>
    %68 = arith.divf %66, %67 : vector<4x6xf32>
    %69 = math.tanh %57 : vector<4x6xf32>
    %70 = arith.negf %58 : vector<4x6xf32>
    %71 = math.exp %70 : vector<4x6xf32>
    %cst_34 = arith.constant 1.000000e+00 : f32
    %72 = vector.broadcast %cst_34 : f32 to vector<4x6xf32>
    %73 = arith.addf %72, %71 : vector<4x6xf32>
    %74 = arith.divf %72, %73 : vector<4x6xf32>
    %75 = arith.mulf %68, %54 : vector<4x6xf32>
    %76 = arith.mulf %63, %69 : vector<4x6xf32>
    %77 = arith.addf %75, %76 : vector<4x6xf32>
    %78 = math.tanh %77 : vector<4x6xf32>
    %79 = arith.mulf %74, %78 : vector<4x6xf32>
    %80 = vector.extract_strided_slice %34 {offsets = [4, 0], sizes = [4, 6], strides = [1, 1]} : vector<24x6xf32> to vector<4x6xf32>
    %81 = vector.extract_strided_slice %40 {offsets = [4, 0], sizes = [4, 6], strides = [1, 1]} : vector<24x6xf32> to vector<4x6xf32>
    %82 = vector.extract_strided_slice %46 {offsets = [4, 0], sizes = [4, 6], strides = [1, 1]} : vector<24x6xf32> to vector<4x6xf32>
    %83 = vector.extract_strided_slice %52 {offsets = [4, 0], sizes = [4, 6], strides = [1, 1]} : vector<24x6xf32> to vector<4x6xf32>
    %cst_35 = arith.constant dense<0.000000e+00> : vector<4x6xf32>
    %84 = tpu.matmul %79, %35, %cst_35 {dimension_numbers = #tpu.dot_dimension_numbers<[1], [0], [0], [1], [0, 0, 1, 1], [], []>} : vector<4x6xf32>, vector<6x6xf32>, vector<4x6xf32> -> vector<4x6xf32>
    %85 = arith.addf %80, %84 : vector<4x6xf32>
    %cst_36 = arith.constant dense<0.000000e+00> : vector<4x6xf32>
    %86 = tpu.matmul %79, %41, %cst_36 {dimension_numbers = #tpu.dot_dimension_numbers<[1], [0], [0], [1], [0, 0, 1, 1], [], []>} : vector<4x6xf32>, vector<6x6xf32>, vector<4x6xf32> -> vector<4x6xf32>
    %87 = arith.addf %81, %86 : vector<4x6xf32>
    %cst_37 = arith.constant dense<0.000000e+00> : vector<4x6xf32>
    %88 = tpu.matmul %79, %47, %cst_37 {dimension_numbers = #tpu.dot_dimension_numbers<[1], [0], [0], [1], [0, 0, 1, 1], [], []>} : vector<4x6xf32>, vector<6x6xf32>, vector<4x6xf32> -> vector<4x6xf32>
    %89 = arith.addf %82, %88 : vector<4x6xf32>
    %cst_38 = arith.constant dense<0.000000e+00> : vector<4x6xf32>
    %90 = tpu.matmul %79, %53, %cst_38 {dimension_numbers = #tpu.dot_dimension_numbers<[1], [0], [0], [1], [0, 0, 1, 1], [], []>} : vector<4x6xf32>, vector<6x6xf32>, vector<4x6xf32> -> vector<4x6xf32>
    %91 = arith.addf %83, %90 : vector<4x6xf32>
    %92 = arith.negf %85 : vector<4x6xf32>
    %93 = math.exp %92 : vector<4x6xf32>
    %cst_39 = arith.constant 1.000000e+00 : f32
    %94 = vector.broadcast %cst_39 : f32 to vector<4x6xf32>
    %95 = arith.addf %94, %93 : vector<4x6xf32>
    %96 = arith.divf %94, %95 : vector<4x6xf32>
    %97 = arith.negf %87 : vector<4x6xf32>
    %98 = math.exp %97 : vector<4x6xf32>
    %cst_40 = arith.constant 1.000000e+00 : f32
    %99 = vector.broadcast %cst_40 : f32 to vector<4x6xf32>
    %100 = arith.addf %99, %98 : vector<4x6xf32>
    %101 = arith.divf %99, %100 : vector<4x6xf32>
    %102 = math.tanh %89 : vector<4x6xf32>
    %103 = arith.negf %91 : vector<4x6xf32>
    %104 = math.exp %103 : vector<4x6xf32>
    %cst_41 = arith.constant 1.000000e+00 : f32
    %105 = vector.broadcast %cst_41 : f32 to vector<4x6xf32>
    %106 = arith.addf %105, %104 : vector<4x6xf32>
    %107 = arith.divf %105, %106 : vector<4x6xf32>
    %108 = arith.mulf %101, %77 : vector<4x6xf32>
    %109 = arith.mulf %96, %102 : vector<4x6xf32>
    %110 = arith.addf %108, %109 : vector<4x6xf32>
    %111 = math.tanh %110 : vector<4x6xf32>
    %112 = arith.mulf %107, %111 : vector<4x6xf32>
    %113 = vector.extract_strided_slice %34 {offsets = [8, 0], sizes = [4, 6], strides = [1, 1]} : vector<24x6xf32> to vector<4x6xf32>
    %114 = vector.extract_strided_slice %40 {offsets = [8, 0], sizes = [4, 6], strides = [1, 1]} : vector<24x6xf32> to vector<4x6xf32>
    %115 = vector.extract_strided_slice %46 {offsets = [8, 0], sizes = [4, 6], strides = [1, 1]} : vector<24x6xf32> to vector<4x6xf32>
    %116 = vector.extract_strided_slice %52 {offsets = [8, 0], sizes = [4, 6], strides = [1, 1]} : vector<24x6xf32> to vector<4x6xf32>
    %cst_42 = arith.constant dense<0.000000e+00> : vector<4x6xf32>
    %117 = tpu.matmul %112, %35, %cst_42 {dimension_numbers = #tpu.dot_dimension_numbers<[1], [0], [0], [1], [0, 0, 1, 1], [], []>} : vector<4x6xf32>, vector<6x6xf32>, vector<4x6xf32> -> vector<4x6xf32>
    %118 = arith.addf %113, %117 : vector<4x6xf32>
    %cst_43 = arith.constant dense<0.000000e+00> : vector<4x6xf32>
    %119 = tpu.matmul %112, %41, %cst_43 {dimension_numbers = #tpu.dot_dimension_numbers<[1], [0], [0], [1], [0, 0, 1, 1], [], []>} : vector<4x6xf32>, vector<6x6xf32>, vector<4x6xf32> -> vector<4x6xf32>
    %120 = arith.addf %114, %119 : vector<4x6xf32>
    %cst_44 = arith.constant dense<0.000000e+00> : vector<4x6xf32>
    %121 = tpu.matmul %112, %47, %cst_44 {dimension_numbers = #tpu.dot_dimension_numbers<[1], [0], [0], [1], [0, 0, 1, 1], [], []>} : vector<4x6xf32>, vector<6x6xf32>, vector<4x6xf32> -> vector<4x6xf32>
    %122 = arith.addf %115, %121 : vector<4x6xf32>
    %cst_45 = arith.constant dense<0.000000e+00> : vector<4x6xf32>
    %123 = tpu.matmul %112, %53, %cst_45 {dimension_numbers = #tpu.dot_dimension_numbers<[1], [0], [0], [1], [0, 0, 1, 1], [], []>} : vector<4x6xf32>, vector<6x6xf32>, vector<4x6xf32> -> vector<4x6xf32>
    %124 = arith.addf %116, %123 : vector<4x6xf32>
    %125 = arith.negf %118 : vector<4x6xf32>
    %126 = math.exp %125 : vector<4x6xf32>
    %cst_46 = arith.constant 1.000000e+00 : f32
    %127 = vector.broadcast %cst_46 : f32 to vector<4x6xf32>
    %128 = arith.addf %127, %126 : vector<4x6xf32>
    %129 = arith.divf %127, %128 : vector<4x6xf32>
    %130 = arith.negf %120 : vector<4x6xf32>
    %131 = math.exp %130 : vector<4x6xf32>
    %cst_47 = arith.constant 1.000000e+00 : f32
    %132 = vector.broadcast %cst_47 : f32 to vector<4x6xf32>
    %133 = arith.addf %132, %131 : vector<4x6xf32>
    %134 = arith.divf %132, %133 : vector<4x6xf32>
    %135 = math.tanh %122 : vector<4x6xf32>
    %136 = arith.negf %124 : vector<4x6xf32>
    %137 = math.exp %136 : vector<4x6xf32>
    %cst_48 = arith.constant 1.000000e+00 : f32
    %138 = vector.broadcast %cst_48 : f32 to vector<4x6xf32>
    %139 = arith.addf %138, %137 : vector<4x6xf32>
    %140 = arith.divf %138, %139 : vector<4x6xf32>
    %141 = arith.mulf %134, %110 : vector<4x6xf32>
    %142 = arith.mulf %129, %135 : vector<4x6xf32>
    %143 = arith.addf %141, %142 : vector<4x6xf32>
    %144 = math.tanh %143 : vector<4x6xf32>
    %145 = arith.mulf %140, %144 : vector<4x6xf32>
    %146 = vector.extract_strided_slice %34 {offsets = [12, 0], sizes = [4, 6], strides = [1, 1]} : vector<24x6xf32> to vector<4x6xf32>
    %147 = vector.extract_strided_slice %40 {offsets = [12, 0], sizes = [4, 6], strides = [1, 1]} : vector<24x6xf32> to vector<4x6xf32>
    %148 = vector.extract_strided_slice %46 {offsets = [12, 0], sizes = [4, 6], strides = [1, 1]} : vector<24x6xf32> to vector<4x6xf32>
    %149 = vector.extract_strided_slice %52 {offsets = [12, 0], sizes = [4, 6], strides = [1, 1]} : vector<24x6xf32> to vector<4x6xf32>
    %cst_49 = arith.constant dense<0.000000e+00> : vector<4x6xf32>
    %150 = tpu.matmul %145, %35, %cst_49 {dimension_numbers = #tpu.dot_dimension_numbers<[1], [0], [0], [1], [0, 0, 1, 1], [], []>} : vector<4x6xf32>, vector<6x6xf32>, vector<4x6xf32> -> vector<4x6xf32>
    %151 = arith.addf %146, %150 : vector<4x6xf32>
    %cst_50 = arith.constant dense<0.000000e+00> : vector<4x6xf32>
    %152 = tpu.matmul %145, %41, %cst_50 {dimension_numbers = #tpu.dot_dimension_numbers<[1], [0], [0], [1], [0, 0, 1, 1], [], []>} : vector<4x6xf32>, vector<6x6xf32>, vector<4x6xf32> -> vector<4x6xf32>
    %153 = arith.addf %147, %152 : vector<4x6xf32>
    %cst_51 = arith.constant dense<0.000000e+00> : vector<4x6xf32>
    %154 = tpu.matmul %145, %47, %cst_51 {dimension_numbers = #tpu.dot_dimension_numbers<[1], [0], [0], [1], [0, 0, 1, 1], [], []>} : vector<4x6xf32>, vector<6x6xf32>, vector<4x6xf32> -> vector<4x6xf32>
    %155 = arith.addf %148, %154 : vector<4x6xf32>
    %cst_52 = arith.constant dense<0.000000e+00> : vector<4x6xf32>
    %156 = tpu.matmul %145, %53, %cst_52 {dimension_numbers = #tpu.dot_dimension_numbers<[1], [0], [0], [1], [0, 0, 1, 1], [], []>} : vector<4x6xf32>, vector<6x6xf32>, vector<4x6xf32> -> vector<4x6xf32>
    %157 = arith.addf %149, %156 : vector<4x6xf32>
    %158 = arith.negf %151 : vector<4x6xf32>
    %159 = math.exp %158 : vector<4x6xf32>
    %cst_53 = arith.constant 1.000000e+00 : f32
    %160 = vector.broadcast %cst_53 : f32 to vector<4x6xf32>
    %161 = arith.addf %160, %159 : vector<4x6xf32>
    %162 = arith.divf %160, %161 : vector<4x6xf32>
    %163 = arith.negf %153 : vector<4x6xf32>
    %164 = math.exp %163 : vector<4x6xf32>
    %cst_54 = arith.constant 1.000000e+00 : f32
    %165 = vector.broadcast %cst_54 : f32 to vector<4x6xf32>
    %166 = arith.addf %165, %164 : vector<4x6xf32>
    %167 = arith.divf %165, %166 : vector<4x6xf32>
    %168 = math.tanh %155 : vector<4x6xf32>
    %169 = arith.negf %157 : vector<4x6xf32>
    %170 = math.exp %169 : vector<4x6xf32>
    %cst_55 = arith.constant 1.000000e+00 : f32
    %171 = vector.broadcast %cst_55 : f32 to vector<4x6xf32>
    %172 = arith.addf %171, %170 : vector<4x6xf32>
    %173 = arith.divf %171, %172 : vector<4x6xf32>
    %174 = arith.mulf %167, %143 : vector<4x6xf32>
    %175 = arith.mulf %162, %168 : vector<4x6xf32>
    %176 = arith.addf %174, %175 : vector<4x6xf32>
    %177 = math.tanh %176 : vector<4x6xf32>
    %178 = arith.mulf %173, %177 : vector<4x6xf32>
    %179 = vector.extract_strided_slice %34 {offsets = [16, 0], sizes = [4, 6], strides = [1, 1]} : vector<24x6xf32> to vector<4x6xf32>
    %180 = vector.extract_strided_slice %40 {offsets = [16, 0], sizes = [4, 6], strides = [1, 1]} : vector<24x6xf32> to vector<4x6xf32>
    %181 = vector.extract_strided_slice %46 {offsets = [16, 0], sizes = [4, 6], strides = [1, 1]} : vector<24x6xf32> to vector<4x6xf32>
    %182 = vector.extract_strided_slice %52 {offsets = [16, 0], sizes = [4, 6], strides = [1, 1]} : vector<24x6xf32> to vector<4x6xf32>
    %cst_56 = arith.constant dense<0.000000e+00> : vector<4x6xf32>
    %183 = tpu.matmul %178, %35, %cst_56 {dimension_numbers = #tpu.dot_dimension_numbers<[1], [0], [0], [1], [0, 0, 1, 1], [], []>} : vector<4x6xf32>, vector<6x6xf32>, vector<4x6xf32> -> vector<4x6xf32>
    %184 = arith.addf %179, %183 : vector<4x6xf32>
    %cst_57 = arith.constant dense<0.000000e+00> : vector<4x6xf32>
    %185 = tpu.matmul %178, %41, %cst_57 {dimension_numbers = #tpu.dot_dimension_numbers<[1], [0], [0], [1], [0, 0, 1, 1], [], []>} : vector<4x6xf32>, vector<6x6xf32>, vector<4x6xf32> -> vector<4x6xf32>
    %186 = arith.addf %180, %185 : vector<4x6xf32>
    %cst_58 = arith.constant dense<0.000000e+00> : vector<4x6xf32>
    %187 = tpu.matmul %178, %47, %cst_58 {dimension_numbers = #tpu.dot_dimension_numbers<[1], [0], [0], [1], [0, 0, 1, 1], [], []>} : vector<4x6xf32>, vector<6x6xf32>, vector<4x6xf32> -> vector<4x6xf32>
    %188 = arith.addf %181, %187 : vector<4x6xf32>
    %cst_59 = arith.constant dense<0.000000e+00> : vector<4x6xf32>
    %189 = tpu.matmul %178, %53, %cst_59 {dimension_numbers = #tpu.dot_dimension_numbers<[1], [0], [0], [1], [0, 0, 1, 1], [], []>} : vector<4x6xf32>, vector<6x6xf32>, vector<4x6xf32> -> vector<4x6xf32>
    %190 = arith.addf %182, %189 : vector<4x6xf32>
    %191 = arith.negf %184 : vector<4x6xf32>
    %192 = math.exp %191 : vector<4x6xf32>
    %cst_60 = arith.constant 1.000000e+00 : f32
    %193 = vector.broadcast %cst_60 : f32 to vector<4x6xf32>
    %194 = arith.addf %193, %192 : vector<4x6xf32>
    %195 = arith.divf %193, %194 : vector<4x6xf32>
    %196 = arith.negf %186 : vector<4x6xf32>
    %197 = math.exp %196 : vector<4x6xf32>
    %cst_61 = arith.constant 1.000000e+00 : f32
    %198 = vector.broadcast %cst_61 : f32 to vector<4x6xf32>
    %199 = arith.addf %198, %197 : vector<4x6xf32>
    %200 = arith.divf %198, %199 : vector<4x6xf32>
    %201 = math.tanh %188 : vector<4x6xf32>
    %202 = arith.negf %190 : vector<4x6xf32>
    %203 = math.exp %202 : vector<4x6xf32>
    %cst_62 = arith.constant 1.000000e+00 : f32
    %204 = vector.broadcast %cst_62 : f32 to vector<4x6xf32>
    %205 = arith.addf %204, %203 : vector<4x6xf32>
    %206 = arith.divf %204, %205 : vector<4x6xf32>
    %207 = arith.mulf %200, %176 : vector<4x6xf32>
    %208 = arith.mulf %195, %201 : vector<4x6xf32>
    %209 = arith.addf %207, %208 : vector<4x6xf32>
    %210 = math.tanh %209 : vector<4x6xf32>
    %211 = arith.mulf %206, %210 : vector<4x6xf32>
    %212 = vector.extract_strided_slice %34 {offsets = [20, 0], sizes = [4, 6], strides = [1, 1]} : vector<24x6xf32> to vector<4x6xf32>
    %213 = vector.extract_strided_slice %40 {offsets = [20, 0], sizes = [4, 6], strides = [1, 1]} : vector<24x6xf32> to vector<4x6xf32>
    %214 = vector.extract_strided_slice %46 {offsets = [20, 0], sizes = [4, 6], strides = [1, 1]} : vector<24x6xf32> to vector<4x6xf32>
    %215 = vector.extract_strided_slice %52 {offsets = [20, 0], sizes = [4, 6], strides = [1, 1]} : vector<24x6xf32> to vector<4x6xf32>
    %cst_63 = arith.constant dense<0.000000e+00> : vector<4x6xf32>
    %216 = tpu.matmul %211, %35, %cst_63 {dimension_numbers = #tpu.dot_dimension_numbers<[1], [0], [0], [1], [0, 0, 1, 1], [], []>} : vector<4x6xf32>, vector<6x6xf32>, vector<4x6xf32> -> vector<4x6xf32>
    %217 = arith.addf %212, %216 : vector<4x6xf32>
    %cst_64 = arith.constant dense<0.000000e+00> : vector<4x6xf32>
    %218 = tpu.matmul %211, %41, %cst_64 {dimension_numbers = #tpu.dot_dimension_numbers<[1], [0], [0], [1], [0, 0, 1, 1], [], []>} : vector<4x6xf32>, vector<6x6xf32>, vector<4x6xf32> -> vector<4x6xf32>
    %219 = arith.addf %213, %218 : vector<4x6xf32>
    %cst_65 = arith.constant dense<0.000000e+00> : vector<4x6xf32>
    %220 = tpu.matmul %211, %47, %cst_65 {dimension_numbers = #tpu.dot_dimension_numbers<[1], [0], [0], [1], [0, 0, 1, 1], [], []>} : vector<4x6xf32>, vector<6x6xf32>, vector<4x6xf32> -> vector<4x6xf32>
    %221 = arith.addf %214, %220 : vector<4x6xf32>
    %cst_66 = arith.constant dense<0.000000e+00> : vector<4x6xf32>
    %222 = tpu.matmul %211, %53, %cst_66 {dimension_numbers = #tpu.dot_dimension_numbers<[1], [0], [0], [1], [0, 0, 1, 1], [], []>} : vector<4x6xf32>, vector<6x6xf32>, vector<4x6xf32> -> vector<4x6xf32>
    %223 = arith.addf %215, %222 : vector<4x6xf32>
    %224 = arith.negf %217 : vector<4x6xf32>
    %225 = math.exp %224 : vector<4x6xf32>
    %cst_67 = arith.constant 1.000000e+00 : f32
    %226 = vector.broadcast %cst_67 : f32 to vector<4x6xf32>
    %227 = arith.addf %226, %225 : vector<4x6xf32>
    %228 = arith.divf %226, %227 : vector<4x6xf32>
    %229 = arith.negf %219 : vector<4x6xf32>
    %230 = math.exp %229 : vector<4x6xf32>
    %cst_68 = arith.constant 1.000000e+00 : f32
    %231 = vector.broadcast %cst_68 : f32 to vector<4x6xf32>
    %232 = arith.addf %231, %230 : vector<4x6xf32>
    %233 = arith.divf %231, %232 : vector<4x6xf32>
    %234 = math.tanh %221 : vector<4x6xf32>
    %235 = arith.negf %223 : vector<4x6xf32>
    %236 = math.exp %235 : vector<4x6xf32>
    %cst_69 = arith.constant 1.000000e+00 : f32
    %237 = vector.broadcast %cst_69 : f32 to vector<4x6xf32>
    %238 = arith.addf %237, %236 : vector<4x6xf32>
    %239 = arith.divf %237, %238 : vector<4x6xf32>
    %240 = arith.mulf %233, %209 : vector<4x6xf32>
    %241 = arith.mulf %228, %234 : vector<4x6xf32>
    %242 = arith.addf %240, %241 : vector<4x6xf32>
    %243 = math.tanh %242 : vector<4x6xf32>
    %244 = arith.mulf %239, %243 : vector<4x6xf32>
    %245 = tpu.concatenate %79, %112, %145, %178, %211, %244 in 1 : vector<4x6xf32>, vector<4x6xf32>, vector<4x6xf32>, vector<4x6xf32>, vector<4x6xf32>, vector<4x6xf32> -> vector<4x36xf32>
    %c0_70 = arith.constant 0 : index
    %c0_71 = arith.constant 0 : index
    %246 = vector.load %arg3[%c0_70, %c0_71] : memref<24x128xf32, #tpu.memory_space<vmem>>, vector<4x36xf32>
    tpu.vector_store %arg3[%c0_70, %c0_71], %245 {strides = array<i32>} : memref<24x128xf32, #tpu.memory_space<vmem>>, vector<4x36xf32>,
    %c88 = arith.constant 88 : index
    %c0_72 = arith.constant 0 : index
    %247 = vector.load %arg1[%c88, %c0_72] : memref<208x128xf32, #tpu.memory_space<vmem>>, vector<36x6xf32>
    %248 = vector.extract_strided_slice %245 {offsets = [2, 0], sizes = [2, 36], strides = [1, 1]} : vector<4x36xf32> to vector<2x36xf32>
    %cst_73 = arith.constant dense<0.000000e+00> : vector<2x6xf32>
    %249 = tpu.matmul %248, %247, %cst_73 {dimension_numbers = #tpu.dot_dimension_numbers<[1], [0], [0], [1], [0, 0, 1, 1], [], []>} : vector<2x36xf32>, vector<36x6xf32>, vector<2x6xf32> -> vector<2x6xf32>
    %250 = arith.addf %249, %28 : vector<2x6xf32>
    %c0_74 = arith.constant 0 : index
    %251 = memref.load %arg0[%c0_74] : memref<1xf32, #tpu.memory_space<smem>>
    %252 = vector.broadcast %251 : f32 to vector<2x6xf32>
    %253 = arith.addf %250, %252 : vector<2x6xf32>
    %254 = arith.negf %253 : vector<2x6xf32>
    %255 = math.exp %254 : vector<2x6xf32>
    %cst_75 = arith.constant 1.000000e+00 : f32
    %256 = vector.broadcast %cst_75 : f32 to vector<2x6xf32>
    %257 = arith.addf %256, %255 : vector<2x6xf32>
    %258 = arith.divf %256, %257 : vector<2x6xf32>
    %c8 = arith.constant 8 : index
    %c0_76 = arith.constant 0 : index
    %259 = vector.load %arg3[%c8, %c0_76] : memref<24x128xf32, #tpu.memory_space<vmem>>, vector<2x6xf32>
    tpu.vector_store %arg3[%c8, %c0_76], %258 {strides = array<i32>} : memref<24x128xf32, #tpu.memory_space<vmem>>, vector<2x6xf32>,
    %c16 = arith.constant 16 : index
    %c0_77 = arith.constant 0 : index
    %260 = vector.load %arg3[%c16, %c0_77] : memref<24x128xf32, #tpu.memory_space<vmem>>, vector<6x6xf32>
    tpu.vector_store %arg3[%c16, %c0_77], %19 {strides = array<i32>} : memref<24x128xf32, #tpu.memory_space<vmem>>, vector<6x6xf32>,
    return
  }
}

</mosaic_0001>

<llo_original>
// kernel: vignn_tcl_forward.1
$region0: #{vignn_tcl_forward.1}
  #allocation0 [shape = 'u32[]', space=smem, size = 0x4, offset = 0x4, fixed_abs, tag = 'smem constant byte address 0x4 - core index']
  #allocation1 [shape = 'u32[72,128]{1,0:T(1,128)}', space=vmem, size = 0x9000, scoped, tag = 'internal scratch']
  #allocation2 [shape = 'f32[1]{0:T(128)S(6)}', space=smem, size = 0x200, scoped, tag = 'scoped memory for vignn_tcl_forward.1']
  %s0 = inlined_call_operand.<no memory space> [shape: f32[1], index: 0, kind: input, shape index: {}]
  %s1 = inlined_call_operand.vmem [shape: f32[208,128], index: 1, kind: input, shape index: {}]
  %s2 = inlined_call_operand.vmem [shape: f32[32,128], index: 2, kind: input, shape index: {}]
  %s3 = inlined_call_operand.vmem [shape: f32[24,128], index: 3, kind: output, shape index: {}]
  %s4 = sld [smem:[#allocation0]]
  $region22: #{vignn_tcl_forward.1} parent=0
    _
  %s6 = ssub.s32 1, %s4
  %s7 = scalar_select 0, %s6, %s4
  %8 = sst [smem:[#allocation2]] %s0
  // Predicated region
  $region2: #{vignn_tcl_forward.1} parent=0 // pred_check
    _
  $region3: #{vignn_tcl_forward.1} parent=0 // pred_check_branch
    %10 = sbr.rel (0) target = $region5
  $region4: #{vignn_tcl_forward.1} parent=0 // pred_region
    _
  $region5: #{vignn_tcl_forward.1} parent=0 // pred_fallthru
    _
  // Predicated region
  $region6: #{vignn_tcl_forward.1} parent=0 // pred_check
    _
  $region7: #{vignn_tcl_forward.1} parent=0 // pred_check_branch
    %12 = sbr.rel (0) target = $region9
  $region8: #{vignn_tcl_forward.1} parent=0 // pred_region
    _
  $region9: #{vignn_tcl_forward.1} parent=0 // pred_fallthru
    _
  // Predicated region
  $region10: #{vignn_tcl_forward.1} parent=0 // pred_check
    _
  $region11: #{vignn_tcl_forward.1} parent=0 // pred_check_branch
    %14 = sbr.rel (0) target = $region13
  $region12: #{vignn_tcl_forward.1} parent=0 // pred_region
    _
  $region13: #{vignn_tcl_forward.1} parent=0 // pred_fallthru
    _
  %15 = vst [vmem:[%s3] sm:$0xff] 0.0
  %16 = vst [vmem:[%s3 + $0x8] sm:$0xff] 0.0
  %17 = vst [vmem:[%s3 + $0x10] sm:$0xff] 0.0
  %v18 = vld [vmem:[%s2 + $0x18] sm:$0x3]
  %v19 = vld [vmem:[%s1] sm:$0xff]
  %v20 = vld [vmem:[%s1 + $0x8] sm:$0xff]
  %v21 = vld [vmem:[%s1 + $0x10] sm:$0xff]
  %v22 = vld [vmem:[%s1 + $0x18] sm:$0xff]
  %v23 = vld [vmem:[%s1 + $0x20] sm:$0xf]
  %v24 = vld [vmem:[%s1 + $0x28] sm:$0x1]
  %v25 = vperm.slane %v24, 0
  %vm26 = vcmask 293888
  %v28 = vsel %vm26, %v18, 0
  %vm30 = vcmask 1043456
  %v32 = vsel %vm30, %v23, 0
  %34 = vmatpush.msra.mxu0 0.0
  %35 = vmatpush.msra.mxu0 0.0
  %36 = vmatpush.msra.mxu0 0.0
  %37 = vmatpush.msra.mxu0 0.0
  %38 = vmatpush.msra.mxu0 0.0
  %39 = vmatpush.msra.mxu0 0.0
  %40 = vmatpush.msra.mxu0 0.0
  %41 = vmatpush.msra.mxu0 0.0
  %42 = vmatpush.msra.mxu0 0.0
  %43 = vmatpush.msra.mxu0 0.0
  %44 = vmatpush.msra.mxu0 0.0
  %45 = vmatpush.msra.mxu0 %v32
  %46 = vmatpush.msra.mxu0 %v22
  %47 = vmatpush.msra.mxu0 %v21
  %48 = vmatpush.msra.mxu0 %v20
  %49 = vmatpush.msra.mxu0 %v19
  %50 = vmatmul.f32.gmra.mxu0 %v28
  %v51 = vpop.f32.mrf.mxu0
  %v52 = vadd.f32 %v25, %v51
  %53 = vdwg.mxu0
  %v54 = vmax.f32 %v52, 0.0
  %v55 = vld [vmem:[%s1 + $0xc8] sm:$0x3f]
  %vm56 = vcmask 46080
  %v57 = vsel %vm56, %v55, -inf
  %58 = vmax.xlane.f32.xlu0 %v57
  %v59 = vpop.xlane.xlu0 %58
  %v60 = vsub.f32 %v55, %v59
  %v61 = vmul.f32 %v60, 1.442695
  %v62 = vpow.pop %v61
  %v63 = vsel %vm56, %v62, 0.0
  %64 = vadd.xlane.f32.xlu0 %v63
  %v65 = vpop.xlane.xlu0 %64
  %v66 = vrcp.pop %v65
  %v67 = vmul.f32 %v65, %v66
  %v68 = vsub.f32 1.0, %v67
  %v69 = vmul.f32 %v66, %v68
  %v70 = vadd.f32 %v66, %v69
  %vm71 = vweird.f32 %v65
  %vm72 = vweird.f32 %v66
  %vm73 = vmor %vm71, %vm72
  %v74 = vsel %vm73, %v66, %v70
  %v75 = vand.u32 2147483647, %v65
  %vm76 = vcmp.eq.f32.partialorder %v75, 8.507059e+37
  %v77 = vand.u32 %v65, 2147483648
  %v78 = vor.u32 1.1754944e-38, %v77
  %v79 = vsel %vm76, %v78, %v74
  %v80 = vmul.f32 %v62, %v79
  %v81 = vlaneseq
  %v82 = vshrl.u32 %v81, 7
  %v83 = vlaneseq
  %v84 = vand.u32 %v83, 127
  %vm85 = vcmp.eq.s32.totalorder %v82, %v84
  %v86 = vsel %vm85, 1, 0
  %v87 = vcvt.s32.f32 %v86
  %v88 = vadd.f32 %v80, %v87
  %v89 = vld [vmem:[%s1 + $0x30] sm:$0xff]
  %v90 = vld [vmem:[%s1 + $0x38] sm:$0xff]
  %v91 = vld [vmem:[%s1 + $0x40] sm:$0xff]
  %v92 = vld [vmem:[%s1 + $0x48] sm:$0xff]
  %v93 = vld [vmem:[%s1 + $0x50] sm:$0xf]
  %v95 = vsel %vm26, %v54, 0
  %v98 = vsel %vm30, %v93, 0
  %100 = vmatpush.msra.mxu0 0.0
  %101 = vmatpush.msra.mxu0 0.0
  %102 = vmatpush.msra.mxu0 0.0
  %103 = vmatpush.msra.mxu0 0.0
  %104 = vmatpush.msra.mxu0 0.0
  %105 = vmatpush.msra.mxu0 0.0
  %106 = vmatpush.msra.mxu0 0.0
  %107 = vmatpush.msra.mxu0 0.0
  %108 = vmatpush.msra.mxu0 0.0
  %109 = vmatpush.msra.mxu0 0.0
  %110 = vmatpush.msra.mxu0 0.0
  %111 = vmatpush.msra.mxu0 %v98
  %112 = vmatpush.msra.mxu0 %v92
  %113 = vmatpush.msra.mxu0 %v91
  %114 = vmatpush.msra.mxu0 %v90
  %115 = vmatpush.msra.mxu0 %v89
  %116 = vmatmul.f32.gmra.mxu0 %v95
  %v117 = vpop.f32.mrf.mxu0
  %v118 = vadd.f32 0.0, %v117
  %119 = vdwg.mxu0
  %vm120 = vcmask 48128
  %v122 = vsel %vm120, %v118, 0
  %v125 = vsel %vm120, %v88, 0
  %127 = vmatpush.xpose.msra.mxu0 0.0
  %128 = vmatpush.xpose.msra.mxu0 0.0
  %129 = vmatpush.xpose.msra.mxu0 0.0
  %130 = vmatpush.xpose.msra.mxu0 0.0
  %131 = vmatpush.xpose.msra.mxu0 0.0
  %132 = vmatpush.xpose.msra.mxu0 0.0
  %133 = vmatpush.xpose.msra.mxu0 0.0
  %134 = vmatpush.xpose.msra.mxu0 0.0
  %135 = vmatpush.xpose.msra.mxu0 0.0
  %136 = vmatpush.xpose.msra.mxu0 0.0
  %137 = vmatpush.xpose.msra.mxu0 0.0
  %138 = vmatpush.xpose.msra.mxu0 0.0
  %139 = vmatpush.xpose.msra.mxu0 0.0
  %140 = vmatpush.xpose.msra.mxu0 0.0
  %141 = vmatpush.xpose.msra.mxu0 0.0
  %142 = vmatpush.xpose.msra.mxu0 %v125
  %143 = vmatmul.f32.gmra.mxu0 %v122
  %v144 = vpop.f32.mrf.mxu0
  %v145 = vadd.f32 0.0, %v144
  %146 = vdwg.mxu0
  %v147 = vld [vmem:[%s2] sm:$0xff]
  %v148 = vld [vmem:[%s2 + $0x8] sm:$0xff]
  %v149 = vld [vmem:[%s2 + $0x10] sm:$0xff]
  %v150 = vld [vmem:[%s1 + $0x80] sm:$0x3f]
  %v151 = vld [vmem:[%s1 + $0xc0] sm:$0x1]
  %v152 = vperm.slane %v151, 0
  %v154 = vsel %vm120, %v147, 0
  %v157 = vsel %vm120, %v148, 0
  %v160 = vsel %vm120, %v149, 0
  %vm162 = vcmask 1045504
  %v164 = vsel %vm162, %v150, 0
  %166 = vmatpush.msra.mxu0 0.0
  %167 = vmatpush.msra.mxu0 0.0
  %168 = vmatpush.msra.mxu0 0.0
  %169 = vmatpush.msra.mxu0 0.0
  %170 = vmatpush.msra.mxu0 0.0
  %171 = vmatpush.msra.mxu0 0.0
  %172 = vmatpush.msra.mxu0 0.0
  %173 = vmatpush.msra.mxu0 0.0
  %174 = vmatpush.msra.mxu0 0.0
  %175 = vmatpush.msra.mxu0 0.0
  %176 = vmatpush.msra.mxu0 0.0
  %177 = vmatpush.msra.mxu0 0.0
  %178 = vmatpush.msra.mxu0 0.0
  %179 = vmatpush.msra.mxu0 0.0
  %180 = vmatpush.msra.mxu0 0.0
  %181 = vmatpush.msra.mxu0 %v164
  %182 = vmatmul.f32.gmra.mxu0 %v154
  %v183 = vpop.f32.mrf.mxu0
  %v184 = vadd.f32 %v152, %v183
  %185 = vmatmul.f32.gmra.mxu0 %v157
  %v186 = vpop.f32.mrf.mxu0
  %v187 = vadd.f32 %v152, %v186
  %188 = vmatmul.f32.gmra.mxu0 %v160
  %v189 = vpop.f32.mrf.mxu0
  %v190 = vadd.f32 %v152, %v189
  %191 = vdwg.mxu0
  %v192 = vld [vmem:[%s1 + $0xa0] sm:$0x3f]
  %v193 = vld [vmem:[%s1 + $0x88] sm:$0x3f]
  %v194 = vld [vmem:[%s1 + $0xc1] sm:$0x1]
  %v195 = vperm.slane %v194, 0
  %v197 = vsel %vm162, %v193, 0
  %199 = vmatpush.msra.mxu0 0.0
  %200 = vmatpush.msra.mxu0 0.0
  %201 = vmatpush.msra.mxu0 0.0
  %202 = vmatpush.msra.mxu0 0.0
  %203 = vmatpush.msra.mxu0 0.0
  %204 = vmatpush.msra.mxu0 0.0
  %205 = vmatpush.msra.mxu0 0.0
  %206 = vmatpush.msra.mxu0 0.0
  %207 = vmatpush.msra.mxu0 0.0
  %208 = vmatpush.msra.mxu0 0.0
  %209 = vmatpush.msra.mxu0 0.0
  %210 = vmatpush.msra.mxu0 0.0
  %211 = vmatpush.msra.mxu0 0.0
  %212 = vmatpush.msra.mxu0 0.0
  %213 = vmatpush.msra.mxu0 0.0
  %214 = vmatpush.msra.mxu0 %v197
  %215 = vmatmul.f32.gmra.mxu0 %v154
  %v216 = vpop.f32.mrf.mxu0
  %v217 = vadd.f32 %v195, %v216
  %218 = vmatmul.f32.gmra.mxu0 %v157
  %v219 = vpop.f32.mrf.mxu0
  %v220 = vadd.f32 %v195, %v219
  %221 = vmatmul.f32.gmra.mxu0 %v160
  %v222 = vpop.f32.mrf.mxu0
  %v223 = vadd.f32 %v195, %v222
  %224 = vdwg.mxu0
  %v225 = vld [vmem:[%s1 + $0xa8] sm:$0x3f]
  %v226 = vld [vmem:[%s1 + $0x90] sm:$0x3f]
  %v227 = vld [vmem:[%s1 + $0xc2] sm:$0x1]
  %v228 = vperm.slane %v227, 0
  %v230 = vsel %vm162, %v226, 0
  %232 = vmatpush.msra.mxu0 0.0
  %233 = vmatpush.msra.mxu0 0.0
  %234 = vmatpush.msra.mxu0 0.0
  %235 = vmatpush.msra.mxu0 0.0
  %236 = vmatpush.msra.mxu0 0.0
  %237 = vmatpush.msra.mxu0 0.0
  %238 = vmatpush.msra.mxu0 0.0
  %239 = vmatpush.msra.mxu0 0.0
  %240 = vmatpush.msra.mxu0 0.0
  %241 = vmatpush.msra.mxu0 0.0
  %242 = vmatpush.msra.mxu0 0.0
  %243 = vmatpush.msra.mxu0 0.0
  %244 = vmatpush.msra.mxu0 0.0
  %245 = vmatpush.msra.mxu0 0.0
  %246 = vmatpush.msra.mxu0 0.0
  %247 = vmatpush.msra.mxu0 %v230
  %248 = vmatmul.f32.gmra.mxu0 %v154
  %v249 = vpop.f32.mrf.mxu0
  %v250 = vadd.f32 %v228, %v249
  %251 = vmatmul.f32.gmra.mxu0 %v157
  %v252 = vpop.f32.mrf.mxu0
  %v253 = vadd.f32 %v228, %v252
  %254 = vmatmul.f32.gmra.mxu0 %v160
  %v255 = vpop.f32.mrf.mxu0
  %v256 = vadd.f32 %v228, %v255
  %257 = vdwg.mxu0
  %v258 = vld [vmem:[%s1 + $0xb0] sm:$0x3f]
  %v259 = vld [vmem:[%s1 + $0x98] sm:$0x3f]
  %v260 = vld [vmem:[%s1 + $0xc3] sm:$0x1]
  %v261 = vperm.slane %v260, 0
  %v263 = vsel %vm162, %v259, 0
  %265 = vmatpush.msra.mxu0 0.0
  %266 = vmatpush.msra.mxu0 0.0
  %267 = vmatpush.msra.mxu0 0.0
  %268 = vmatpush.msra.mxu0 0.0
  %269 = vmatpush.msra.mxu0 0.0
  %270 = vmatpush.msra.mxu0 0.0
  %271 = vmatpush.msra.mxu0 0.0
  %272 = vmatpush.msra.mxu0 0.0
  %273 = vmatpush.msra.mxu0 0.0
  %274 = vmatpush.msra.mxu0 0.0
  %275 = vmatpush.msra.mxu0 0.0
  %276 = vmatpush.msra.mxu0 0.0
  %277 = vmatpush.msra.mxu0 0.0
  %278 = vmatpush.msra.mxu0 0.0
  %279 = vmatpush.msra.mxu0 0.0
  %280 = vmatpush.msra.mxu0 %v263
  %281 = vmatmul.f32.gmra.mxu0 %v154
  %v282 = vpop.f32.mrf.mxu0
  %v283 = vadd.f32 %v261, %v282
  %284 = vmatmul.f32.gmra.mxu0 %v157
  %v285 = vpop.f32.mrf.mxu0
  %v286 = vadd.f32 %v261, %v285
  %287 = vmatmul.f32.gmra.mxu0 %v160
  %v288 = vpop.f32.mrf.mxu0
  %v289 = vadd.f32 %v261, %v288
  %290 = vdwg.mxu0
  %v291 = vld [vmem:[%s1 + $0xb8] sm:$0x3f]
  %v292 = vxor.u32 %v184, 2147483648
  %v293 = vmul.f32 %v292, 1.442695
  %v294 = vpow.pop %v293
  %v295 = vadd.f32 %v294, 1.0
  %v296 = vrcp.pop %v295
  %v297 = vmul.f32 %v295, %v296
  %v298 = vsub.f32 1.0, %v297
  %v299 = vmul.f32 %v296, %v298
  %v300 = vadd.f32 %v296, %v299
  %vm301 = vweird.f32 %v295
  %vm302 = vweird.f32 %v296
  %vm303 = vmor %vm301, %vm302
  %v304 = vsel %vm303, %v296, %v300
  %v305 = vand.u32 2147483647, %v295
  %vm306 = vcmp.eq.f32.partialorder %v305, 8.507059e+37
  %v307 = vand.u32 %v295, 2147483648
  %v308 = vor.u32 1.1754944e-38, %v307
  %v309 = vsel %vm306, %v308, %v304
  %v310 = vmul.f32 1.0, %v309
  %v311 = vxor.u32 %v217, 2147483648
  %v312 = vmul.f32 %v311, 1.442695
  %v313 = vpow.pop %v312
  %v314 = vadd.f32 %v313, 1.0
  %v315 = vrcp.pop %v314
  %v316 = vmul.f32 %v314, %v315
  %v317 = vsub.f32 1.0, %v316
  %v318 = vmul.f32 %v315, %v317
  %v319 = vadd.f32 %v315, %v318
  %vm320 = vweird.f32 %v314
  %vm321 = vweird.f32 %v315
  %vm322 = vmor %vm320, %vm321
  %v323 = vsel %vm322, %v315, %v319
  %v324 = vand.u32 2147483647, %v314
  %vm325 = vcmp.eq.f32.partialorder %v324, 8.507059e+37
  %v326 = vand.u32 %v314, 2147483648
  %v327 = vor.u32 1.1754944e-38, %v326
  %v328 = vsel %vm325, %v327, %v323
  %v329 = vmul.f32 1.0, %v328
  %v330 = vtanh.pop %v250
  %v331 = vxor.u32 %v283, 2147483648
  %v332 = vmul.f32 %v331, 1.442695
  %v333 = vpow.pop %v332
  %v334 = vadd.f32 %v333, 1.0
  %v335 = vrcp.pop %v334
  %v336 = vmul.f32 %v334, %v335
  %v337 = vsub.f32 1.0, %v336
  %v338 = vmul.f32 %v335, %v337
  %v339 = vadd.f32 %v335, %v338
  %vm340 = vweird.f32 %v334
  %vm341 = vweird.f32 %v335
  %vm342 = vmor %vm340, %vm341
  %v343 = vsel %vm342, %v335, %v339
  %v344 = vand.u32 2147483647, %v334
  %vm345 = vcmp.eq.f32.partialorder %v344, 8.507059e+37
  %v346 = vand.u32 %v334, 2147483648
  %v347 = vor.u32 1.1754944e-38, %v346
  %v348 = vsel %vm345, %v347, %v343
  %v349 = vmul.f32 1.0, %v348
  %v350 = vmul.f32 %v329, 0.0
  %v351 = vmul.f32 %v310, %v330
  %v352 = vadd.f32 %v350, %v351
  %v353 = vtanh.pop %v352
  %v354 = vmul.f32 %v349, %v353
  %v356 = vsel %vm120, %v354, 0
  %v359 = vsel %vm162, %v192, 0
  %361 = vmatpush.msra.mxu0 0.0
  %362 = vmatpush.msra.mxu0 0.0
  %363 = vmatpush.msra.mxu0 0.0
  %364 = vmatpush.msra.mxu0 0.0
  %365 = vmatpush.msra.mxu0 0.0
  %366 = vmatpush.msra.mxu0 0.0
  %367 = vmatpush.msra.mxu0 0.0
  %368 = vmatpush.msra.mxu0 0.0
  %369 = vmatpush.msra.mxu0 0.0
  %370 = vmatpush.msra.mxu0 0.0
  %371 = vmatpush.msra.mxu0 0.0
  %372 = vmatpush.msra.mxu0 0.0
  %373 = vmatpush.msra.mxu0 0.0
  %374 = vmatpush.msra.mxu0 0.0
  %375 = vmatpush.msra.mxu0 0.0
  %376 = vmatpush.msra.mxu0 %v359
  %377 = vmatmul.f32.gmra.mxu0 %v356
  %v378 = vpop.f32.mrf.mxu0
  %v379 = vadd.f32 0.0, %v378
  %380 = vdwg.mxu0
  %v382 = vrot.slane %v379, 4
  %v384 = vadd.f32 %v184, %v382
  %v386 = vsel %vm162, %v225, 0
  %388 = vmatpush.msra.mxu0 0.0
  %389 = vmatpush.msra.mxu0 0.0
  %390 = vmatpush.msra.mxu0 0.0
  %391 = vmatpush.msra.mxu0 0.0
  %392 = vmatpush.msra.mxu0 0.0
  %393 = vmatpush.msra.mxu0 0.0
  %394 = vmatpush.msra.mxu0 0.0
  %395 = vmatpush.msra.mxu0 0.0
  %396 = vmatpush.msra.mxu0 0.0
  %397 = vmatpush.msra.mxu0 0.0
  %398 = vmatpush.msra.mxu0 0.0
  %399 = vmatpush.msra.mxu0 0.0
  %400 = vmatpush.msra.mxu0 0.0
  %401 = vmatpush.msra.mxu0 0.0
  %402 = vmatpush.msra.mxu0 0.0
  %403 = vmatpush.msra.mxu0 %v386
  %404 = vmatmul.f32.gmra.mxu0 %v356
  %v405 = vpop.f32.mrf.mxu0
  %v406 = vadd.f32 0.0, %v405
  %407 = vdwg.mxu0
  %v409 = vrot.slane %v406, 4
  %v411 = vadd.f32 %v217, %v409
  %v413 = vsel %vm162, %v258, 0
  %415 = vmatpush.msra.mxu0 0.0
  %416 = vmatpush.msra.mxu0 0.0
  %417 = vmatpush.msra.mxu0 0.0
  %418 = vmatpush.msra.mxu0 0.0
  %419 = vmatpush.msra.mxu0 0.0
  %420 = vmatpush.msra.mxu0 0.0
  %421 = vmatpush.msra.mxu0 0.0
  %422 = vmatpush.msra.mxu0 0.0
  %423 = vmatpush.msra.mxu0 0.0
  %424 = vmatpush.msra.mxu0 0.0
  %425 = vmatpush.msra.mxu0 0.0
  %426 = vmatpush.msra.mxu0 0.0
  %427 = vmatpush.msra.mxu0 0.0
  %428 = vmatpush.msra.mxu0 0.0
  %429 = vmatpush.msra.mxu0 0.0
  %430 = vmatpush.msra.mxu0 %v413
  %431 = vmatmul.f32.gmra.mxu0 %v356
  %v432 = vpop.f32.mrf.mxu0
  %v433 = vadd.f32 0.0, %v432
  %434 = vdwg.mxu0
  %v436 = vrot.slane %v433, 4
  %v438 = vadd.f32 %v250, %v436
  %v440 = vsel %vm162, %v291, 0
  %442 = vmatpush.msra.mxu0 0.0
  %443 = vmatpush.msra.mxu0 0.0
  %444 = vmatpush.msra.mxu0 0.0
  %445 = vmatpush.msra.mxu0 0.0
  %446 = vmatpush.msra.mxu0 0.0
  %447 = vmatpush.msra.mxu0 0.0
  %448 = vmatpush.msra.mxu0 0.0
  %449 = vmatpush.msra.mxu0 0.0
  %450 = vmatpush.msra.mxu0 0.0
  %451 = vmatpush.msra.mxu0 0.0
  %452 = vmatpush.msra.mxu0 0.0
  %453 = vmatpush.msra.mxu0 0.0
  %454 = vmatpush.msra.mxu0 0.0
  %455 = vmatpush.msra.mxu0 0.0
  %456 = vmatpush.msra.mxu0 0.0
  %457 = vmatpush.msra.mxu0 %v440
  %458 = vmatmul.f32.gmra.mxu0 %v356
  %v459 = vpop.f32.mrf.mxu0
  %v460 = vadd.f32 0.0, %v459
  %461 = vdwg.mxu0
  %v463 = vrot.slane %v460, 4
  %v465 = vadd.f32 %v283, %v463
  %v466 = vxor.u32 %v384, 2147483648
  %v467 = vmul.f32 %v466, 1.442695
  %v468 = vpow.pop %v467
  %v469 = vadd.f32 %v468, 1.0
  %v470 = vrcp.pop %v469
  %v471 = vmul.f32 %v469, %v470
  %v472 = vsub.f32 1.0, %v471
  %v473 = vmul.f32 %v470, %v472
  %v474 = vadd.f32 %v470, %v473
  %vm475 = vweird.f32 %v469
  %vm476 = vweird.f32 %v470
  %vm477 = vmor %vm475, %vm476
  %v478 = vsel %vm477, %v470, %v474
  %v479 = vand.u32 2147483647, %v469
  %vm480 = vcmp.eq.f32.partialorder %v479, 8.507059e+37
  %v481 = vand.u32 %v469, 2147483648
  %v482 = vor.u32 1.1754944e-38, %v481
  %v483 = vsel %vm480, %v482, %v478
  %v484 = vmul.f32 1.0, %v483
  %v485 = vxor.u32 %v411, 2147483648
  %v486 = vmul.f32 %v485, 1.442695
  %v487 = vpow.pop %v486
  %v488 = vadd.f32 %v487, 1.0
  %v489 = vrcp.pop %v488
  %v490 = vmul.f32 %v488, %v489
  %v491 = vsub.f32 1.0, %v490
  %v492 = vmul.f32 %v489, %v491
  %v493 = vadd.f32 %v489, %v492
  %vm494 = vweird.f32 %v488
  %vm495 = vweird.f32 %v489
  %vm496 = vmor %vm494, %vm495
  %v497 = vsel %vm496, %v489, %v493
  %v498 = vand.u32 2147483647, %v488
  %vm499 = vcmp.eq.f32.partialorder %v498, 8.507059e+37
  %v500 = vand.u32 %v488, 2147483648
  %v501 = vor.u32 1.1754944e-38, %v500
  %v502 = vsel %vm499, %v501, %v497
  %v503 = vmul.f32 1.0, %v502
  %v504 = vtanh.pop %v438
  %v505 = vxor.u32 %v465, 2147483648
  %v506 = vmul.f32 %v505, 1.442695
  %v507 = vpow.pop %v506
  %v508 = vadd.f32 %v507, 1.0
  %v509 = vrcp.pop %v508
  %v510 = vmul.f32 %v508, %v509
  %v511 = vsub.f32 1.0, %v510
  %v512 = vmul.f32 %v509, %v511
  %v513 = vadd.f32 %v509, %v512
  %vm514 = vweird.f32 %v508
  %vm515 = vweird.f32 %v509
  %vm516 = vmor %vm514, %vm515
  %v517 = vsel %vm516, %v509, %v513
  %v518 = vand.u32 2147483647, %v508
  %vm519 = vcmp.eq.f32.partialorder %v518, 8.507059e+37
  %v520 = vand.u32 %v508, 2147483648
  %v521 = vor.u32 1.1754944e-38, %v520
  %v522 = vsel %vm519, %v521, %v517
  %v523 = vmul.f32 1.0, %v522
  %v525 = vrot.slane %v352, 4
  %v527 = vmul.f32 %v503, %v525
  %v528 = vmul.f32 %v484, %v504
  %v529 = vadd.f32 %v527, %v528
  %v530 = vtanh.pop %v529
  %v531 = vmul.f32 %v523, %v530
  %v533 = vrot.slane %v531, 4
  %v534 = vsel %vm120, %v533, 0
  %536 = vmatpush.msra.mxu0 0.0
  %537 = vmatpush.msra.mxu0 0.0
  %538 = vmatpush.msra.mxu0 0.0
  %539 = vmatpush.msra.mxu0 0.0
  %540 = vmatpush.msra.mxu0 0.0
  %541 = vmatpush.msra.mxu0 0.0
  %542 = vmatpush.msra.mxu0 0.0
  %543 = vmatpush.msra.mxu0 0.0
  %544 = vmatpush.msra.mxu0 0.0
  %545 = vmatpush.msra.mxu0 0.0
  %546 = vmatpush.msra.mxu0 0.0
  %547 = vmatpush.msra.mxu0 0.0
  %548 = vmatpush.msra.mxu0 0.0
  %549 = vmatpush.msra.mxu0 0.0
  %550 = vmatpush.msra.mxu0 0.0
  %551 = vmatpush.msra.mxu0 %v359
  %552 = vmatmul.f32.gmra.mxu0 %v534
  %v553 = vpop.f32.mrf.mxu0
  %v554 = vadd.f32 0.0, %v553
  %555 = vdwg.mxu0
  %v556 = vadd.f32 %v187, %v554
  %557 = vmatpush.msra.mxu0 0.0
  %558 = vmatpush.msra.mxu0 0.0
  %559 = vmatpush.msra.mxu0 0.0
  %560 = vmatpush.msra.mxu0 0.0
  %561 = vmatpush.msra.mxu0 0.0
  %562 = vmatpush.msra.mxu0 0.0
  %563 = vmatpush.msra.mxu0 0.0
  %564 = vmatpush.msra.mxu0 0.0
  %565 = vmatpush.msra.mxu0 0.0
  %566 = vmatpush.msra.mxu0 0.0
  %567 = vmatpush.msra.mxu0 0.0
  %568 = vmatpush.msra.mxu0 0.0
  %569 = vmatpush.msra.mxu0 0.0
  %570 = vmatpush.msra.mxu0 0.0
  %571 = vmatpush.msra.mxu0 0.0
  %572 = vmatpush.msra.mxu0 %v386
  %573 = vmatmul.f32.gmra.mxu0 %v534
  %v574 = vpop.f32.mrf.mxu0
  %v575 = vadd.f32 0.0, %v574
  %576 = vdwg.mxu0
  %v577 = vadd.f32 %v220, %v575
  %578 = vmatpush.msra.mxu0 0.0
  %579 = vmatpush.msra.mxu0 0.0
  %580 = vmatpush.msra.mxu0 0.0
  %581 = vmatpush.msra.mxu0 0.0
  %582 = vmatpush.msra.mxu0 0.0
  %583 = vmatpush.msra.mxu0 0.0
  %584 = vmatpush.msra.mxu0 0.0
  %585 = vmatpush.msra.mxu0 0.0
  %586 = vmatpush.msra.mxu0 0.0
  %587 = vmatpush.msra.mxu0 0.0
  %588 = vmatpush.msra.mxu0 0.0
  %589 = vmatpush.msra.mxu0 0.0
  %590 = vmatpush.msra.mxu0 0.0
  %591 = vmatpush.msra.mxu0 0.0
  %592 = vmatpush.msra.mxu0 0.0
  %593 = vmatpush.msra.mxu0 %v413
  %594 = vmatmul.f32.gmra.mxu0 %v534
  %v595 = vpop.f32.mrf.mxu0
  %v596 = vadd.f32 0.0, %v595
  %597 = vdwg.mxu0
  %v598 = vadd.f32 %v253, %v596
  %599 = vmatpush.msra.mxu0 0.0
  %600 = vmatpush.msra.mxu0 0.0
  %601 = vmatpush.msra.mxu0 0.0
  %602 = vmatpush.msra.mxu0 0.0
  %603 = vmatpush.msra.mxu0 0.0
  %604 = vmatpush.msra.mxu0 0.0
  %605 = vmatpush.msra.mxu0 0.0
  %606 = vmatpush.msra.mxu0 0.0
  %607 = vmatpush.msra.mxu0 0.0
  %608 = vmatpush.msra.mxu0 0.0
  %609 = vmatpush.msra.mxu0 0.0
  %610 = vmatpush.msra.mxu0 0.0
  %611 = vmatpush.msra.mxu0 0.0
  %612 = vmatpush.msra.mxu0 0.0
  %613 = vmatpush.msra.mxu0 0.0
  %614 = vmatpush.msra.mxu0 %v440
  %615 = vmatmul.f32.gmra.mxu0 %v534
  %v616 = vpop.f32.mrf.mxu0
  %v617 = vadd.f32 0.0, %v616
  %618 = vdwg.mxu0
  %v619 = vadd.f32 %v286, %v617
  %v620 = vxor.u32 %v556, 2147483648
  %v621 = vmul.f32 %v620, 1.442695
  %v622 = vpow.pop %v621
  %v623 = vadd.f32 %v622, 1.0
  %v624 = vrcp.pop %v623
  %v625 = vmul.f32 %v623, %v624
  %v626 = vsub.f32 1.0, %v625
  %v627 = vmul.f32 %v624, %v626
  %v628 = vadd.f32 %v624, %v627
  %vm629 = vweird.f32 %v623
  %vm630 = vweird.f32 %v624
  %vm631 = vmor %vm629, %vm630
  %v632 = vsel %vm631, %v624, %v628
  %v633 = vand.u32 2147483647, %v623
  %vm634 = vcmp.eq.f32.partialorder %v633, 8.507059e+37
  %v635 = vand.u32 %v623, 2147483648
  %v636 = vor.u32 1.1754944e-38, %v635
  %v637 = vsel %vm634, %v636, %v632
  %v638 = vmul.f32 1.0, %v637
  %v639 = vxor.u32 %v577, 2147483648
  %v640 = vmul.f32 %v639, 1.442695
  %v641 = vpow.pop %v640
  %v642 = vadd.f32 %v641, 1.0
  %v643 = vrcp.pop %v642
  %v644 = vmul.f32 %v642, %v643
  %v645 = vsub.f32 1.0, %v644
  %v646 = vmul.f32 %v643, %v645
  %v647 = vadd.f32 %v643, %v646
  %vm648 = vweird.f32 %v642
  %vm649 = vweird.f32 %v643
  %vm650 = vmor %vm648, %vm649
  %v651 = vsel %vm650, %v643, %v647
  %v652 = vand.u32 2147483647, %v642
  %vm653 = vcmp.eq.f32.partialorder %v652, 8.507059e+37
  %v654 = vand.u32 %v642, 2147483648
  %v655 = vor.u32 1.1754944e-38, %v654
  %v656 = vsel %vm653, %v655, %v651
  %v657 = vmul.f32 1.0, %v656
  %v658 = vtanh.pop %v598
  %v659 = vxor.u32 %v619, 2147483648
  %v660 = vmul.f32 %v659, 1.442695
  %v661 = vpow.pop %v660
  %v662 = vadd.f32 %v661, 1.0
  %v663 = vrcp.pop %v662
  %v664 = vmul.f32 %v662, %v663
  %v665 = vsub.f32 1.0, %v664
  %v666 = vmul.f32 %v663, %v665
  %v667 = vadd.f32 %v663, %v666
  %vm668 = vweird.f32 %v662
  %vm669 = vweird.f32 %v663
  %vm670 = vmor %vm668, %vm669
  %v671 = vsel %vm670, %v663, %v667
  %v672 = vand.u32 2147483647, %v662
  %vm673 = vcmp.eq.f32.partialorder %v672, 8.507059e+37
  %v674 = vand.u32 %v662, 2147483648
  %v675 = vor.u32 1.1754944e-38, %v674
  %v676 = vsel %vm673, %v675, %v671
  %v677 = vmul.f32 1.0, %v676
  %v679 = vrot.slane %v529, 4
  %v681 = vmul.f32 %v657, %v679
  %v682 = vmul.f32 %v638, %v658
  %v683 = vadd.f32 %v681, %v682
  %v684 = vtanh.pop %v683
  %v685 = vmul.f32 %v677, %v684
  %v687 = vsel %vm120, %v685, 0
  %689 = vmatpush.msra.mxu0 0.0
  %690 = vmatpush.msra.mxu0 0.0
  %691 = vmatpush.msra.mxu0 0.0
  %692 = vmatpush.msra.mxu0 0.0
  %693 = vmatpush.msra.mxu0 0.0
  %694 = vmatpush.msra.mxu0 0.0
  %695 = vmatpush.msra.mxu0 0.0
  %696 = vmatpush.msra.mxu0 0.0
  %697 = vmatpush.msra.mxu0 0.0
  %698 = vmatpush.msra.mxu0 0.0
  %699 = vmatpush.msra.mxu0 0.0
  %700 = vmatpush.msra.mxu0 0.0
  %701 = vmatpush.msra.mxu0 0.0
  %702 = vmatpush.msra.mxu0 0.0
  %703 = vmatpush.msra.mxu0 0.0
  %704 = vmatpush.msra.mxu0 %v359
  %705 = vmatmul.f32.gmra.mxu0 %v687
  %v706 = vpop.f32.mrf.mxu0
  %v707 = vadd.f32 0.0, %v706
  %708 = vdwg.mxu0
  %v710 = vrot.slane %v707, 4
  %v712 = vadd.f32 %v187, %v710
  %713 = vmatpush.msra.mxu0 0.0
  %714 = vmatpush.msra.mxu0 0.0
  %715 = vmatpush.msra.mxu0 0.0
  %716 = vmatpush.msra.mxu0 0.0
  %717 = vmatpush.msra.mxu0 0.0
  %718 = vmatpush.msra.mxu0 0.0
  %719 = vmatpush.msra.mxu0 0.0
  %720 = vmatpush.msra.mxu0 0.0
  %721 = vmatpush.msra.mxu0 0.0
  %722 = vmatpush.msra.mxu0 0.0
  %723 = vmatpush.msra.mxu0 0.0
  %724 = vmatpush.msra.mxu0 0.0
  %725 = vmatpush.msra.mxu0 0.0
  %726 = vmatpush.msra.mxu0 0.0
  %727 = vmatpush.msra.mxu0 0.0
  %728 = vmatpush.msra.mxu0 %v386
  %729 = vmatmul.f32.gmra.mxu0 %v687
  %v730 = vpop.f32.mrf.mxu0
  %v731 = vadd.f32 0.0, %v730
  %732 = vdwg.mxu0
  %v734 = vrot.slane %v731, 4
  %v736 = vadd.f32 %v220, %v734
  %737 = vmatpush.msra.mxu0 0.0
  %738 = vmatpush.msra.mxu0 0.0
  %739 = vmatpush.msra.mxu0 0.0
  %740 = vmatpush.msra.mxu0 0.0
  %741 = vmatpush.msra.mxu0 0.0
  %742 = vmatpush.msra.mxu0 0.0
  %743 = vmatpush.msra.mxu0 0.0
  %744 = vmatpush.msra.mxu0 0.0
  %745 = vmatpush.msra.mxu0 0.0
  %746 = vmatpush.msra.mxu0 0.0
  %747 = vmatpush.msra.mxu0 0.0
  %748 = vmatpush.msra.mxu0 0.0
  %749 = vmatpush.msra.mxu0 0.0
  %750 = vmatpush.msra.mxu0 0.0
  %751 = vmatpush.msra.mxu0 0.0
  %752 = vmatpush.msra.mxu0 %v413
  %753 = vmatmul.f32.gmra.mxu0 %v687
  %v754 = vpop.f32.mrf.mxu0
  %v755 = vadd.f32 0.0, %v754
  %756 = vdwg.mxu0
  %v758 = vrot.slane %v755, 4
  %v760 = vadd.f32 %v253, %v758
  %761 = vmatpush.msra.mxu0 0.0
  %762 = vmatpush.msra.mxu0 0.0
  %763 = vmatpush.msra.mxu0 0.0
  %764 = vmatpush.msra.mxu0 0.0
  %765 = vmatpush.msra.mxu0 0.0
  %766 = vmatpush.msra.mxu0 0.0
  %767 = vmatpush.msra.mxu0 0.0
  %768 = vmatpush.msra.mxu0 0.0
  %769 = vmatpush.msra.mxu0 0.0
  %770 = vmatpush.msra.mxu0 0.0
  %771 = vmatpush.msra.mxu0 0.0
  %772 = vmatpush.msra.mxu0 0.0
  %773 = vmatpush.msra.mxu0 0.0
  %774 = vmatpush.msra.mxu0 0.0
  %775 = vmatpush.msra.mxu0 0.0
  %776 = vmatpush.msra.mxu0 %v440
  %777 = vmatmul.f32.gmra.mxu0 %v687
  %v778 = vpop.f32.mrf.mxu0
  %v779 = vadd.f32 0.0, %v778
  %780 = vdwg.mxu0
  %v782 = vrot.slane %v779, 4
  %v784 = vadd.f32 %v286, %v782
  %v785 = vxor.u32 %v712, 2147483648
  %v786 = vmul.f32 %v785, 1.442695
  %v787 = vpow.pop %v786
  %v788 = vadd.f32 %v787, 1.0
  %v789 = vrcp.pop %v788
  %v790 = vmul.f32 %v788, %v789
  %v791 = vsub.f32 1.0, %v790
  %v792 = vmul.f32 %v789, %v791
  %v793 = vadd.f32 %v789, %v792
  %vm794 = vweird.f32 %v788
  %vm795 = vweird.f32 %v789
  %vm796 = vmor %vm794, %vm795
  %v797 = vsel %vm796, %v789, %v793
  %v798 = vand.u32 2147483647, %v788
  %vm799 = vcmp.eq.f32.partialorder %v798, 8.507059e+37
  %v800 = vand.u32 %v788, 2147483648
  %v801 = vor.u32 1.1754944e-38, %v800
  %v802 = vsel %vm799, %v801, %v797
  %v803 = vmul.f32 1.0, %v802
  %v804 = vxor.u32 %v736, 2147483648
  %v805 = vmul.f32 %v804, 1.442695
  %v806 = vpow.pop %v805
  %v807 = vadd.f32 %v806, 1.0
  %v808 = vrcp.pop %v807
  %v809 = vmul.f32 %v807, %v808
  %v810 = vsub.f32 1.0, %v809
  %v811 = vmul.f32 %v808, %v810
  %v812 = vadd.f32 %v808, %v811
  %vm813 = vweird.f32 %v807
  %vm814 = vweird.f32 %v808
  %vm815 = vmor %vm813, %vm814
  %v816 = vsel %vm815, %v808, %v812
  %v817 = vand.u32 2147483647, %v807
  %vm818 = vcmp.eq.f32.partialorder %v817, 8.507059e+37
  %v819 = vand.u32 %v807, 2147483648
  %v820 = vor.u32 1.1754944e-38, %v819
  %v821 = vsel %vm818, %v820, %v816
  %v822 = vmul.f32 1.0, %v821
  %v823 = vtanh.pop %v760
  %v824 = vxor.u32 %v784, 2147483648
  %v825 = vmul.f32 %v824, 1.442695
  %v826 = vpow.pop %v825
  %v827 = vadd.f32 %v826, 1.0
  %v828 = vrcp.pop %v827
  %v829 = vmul.f32 %v827, %v828
  %v830 = vsub.f32 1.0, %v829
  %v831 = vmul.f32 %v828, %v830
  %v832 = vadd.f32 %v828, %v831
  %vm833 = vweird.f32 %v827
  %vm834 = vweird.f32 %v828
  %vm835 = vmor %vm833, %vm834
  %v836 = vsel %vm835, %v828, %v832
  %v837 = vand.u32 2147483647, %v827
  %vm838 = vcmp.eq.f32.partialorder %v837, 8.507059e+37
  %v839 = vand.u32 %v827, 2147483648
  %v840 = vor.u32 1.1754944e-38, %v839
  %v841 = vsel %vm838, %v840, %v836
  %v842 = vmul.f32 1.0, %v841
  %v844 = vrot.slane %v683, 4
  %v846 = vmul.f32 %v822, %v844
  %v847 = vmul.f32 %v803, %v823
  %v848 = vadd.f32 %v846, %v847
  %v849 = vtanh.pop %v848
  %v850 = vmul.f32 %v842, %v849
  %v852 = vrot.slane %v850, 4
  %v853 = vsel %vm120, %v852, 0
  %855 = vmatpush.msra.mxu0 0.0
  %856 = vmatpush.msra.mxu0 0.0
  %857 = vmatpush.msra.mxu0 0.0
  %858 = vmatpush.msra.mxu0 0.0
  %859 = vmatpush.msra.mxu0 0.0
  %860 = vmatpush.msra.mxu0 0.0
  %861 = vmatpush.msra.mxu0 0.0
  %862 = vmatpush.msra.mxu0 0.0
  %863 = vmatpush.msra.mxu0 0.0
  %864 = vmatpush.msra.mxu0 0.0
  %865 = vmatpush.msra.mxu0 0.0
  %866 = vmatpush.msra.mxu0 0.0
  %867 = vmatpush.msra.mxu0 0.0
  %868 = vmatpush.msra.mxu0 0.0
  %869 = vmatpush.msra.mxu0 0.0
  %870 = vmatpush.msra.mxu0 %v359
  %871 = vmatmul.f32.gmra.mxu0 %v853
  %v872 = vpop.f32.mrf.mxu0
  %v873 = vadd.f32 0.0, %v872
  %874 = vdwg.mxu0
  %v875 = vadd.f32 %v190, %v873
  %876 = vmatpush.msra.mxu0 0.0
  %877 = vmatpush.msra.mxu0 0.0
  %878 = vmatpush.msra.mxu0 0.0
  %879 = vmatpush.msra.mxu0 0.0
  %880 = vmatpush.msra.mxu0 0.0
  %881 = vmatpush.msra.mxu0 0.0
  %882 = vmatpush.msra.mxu0 0.0
  %883 = vmatpush.msra.mxu0 0.0
  %884 = vmatpush.msra.mxu0 0.0
  %885 = vmatpush.msra.mxu0 0.0
  %886 = vmatpush.msra.mxu0 0.0
  %887 = vmatpush.msra.mxu0 0.0
  %888 = vmatpush.msra.mxu0 0.0
  %889 = vmatpush.msra.mxu0 0.0
  %890 = vmatpush.msra.mxu0 0.0
  %891 = vmatpush.msra.mxu0 %v386
  %892 = vmatmul.f32.gmra.mxu0 %v853
  %v893 = vpop.f32.mrf.mxu0
  %v894 = vadd.f32 0.0, %v893
  %895 = vdwg.mxu0
  %v896 = vadd.f32 %v223, %v894
  %897 = vmatpush.msra.mxu0 0.0
  %898 = vmatpush.msra.mxu0 0.0
  %899 = vmatpush.msra.mxu0 0.0
  %900 = vmatpush.msra.mxu0 0.0
  %901 = vmatpush.msra.mxu0 0.0
  %902 = vmatpush.msra.mxu0 0.0
  %903 = vmatpush.msra.mxu0 0.0
  %904 = vmatpush.msra.mxu0 0.0
  %905 = vmatpush.msra.mxu0 0.0
  %906 = vmatpush.msra.mxu0 0.0
  %907 = vmatpush.msra.mxu0 0.0
  %908 = vmatpush.msra.mxu0 0.0
  %909 = vmatpush.msra.mxu0 0.0
  %910 = vmatpush.msra.mxu0 0.0
  %911 = vmatpush.msra.mxu0 0.0
  %912 = vmatpush.msra.mxu0 %v413
  %913 = vmatmul.f32.gmra.mxu0 %v853
  %v914 = vpop.f32.mrf.mxu0
  %v915 = vadd.f32 0.0, %v914
  %916 = vdwg.mxu0
  %v917 = vadd.f32 %v256, %v915
  %918 = vmatpush.msra.mxu0 0.0
  %919 = vmatpush.msra.mxu0 0.0
  %920 = vmatpush.msra.mxu0 0.0
  %921 = vmatpush.msra.mxu0 0.0
  %922 = vmatpush.msra.mxu0 0.0
  %923 = vmatpush.msra.mxu0 0.0
  %924 = vmatpush.msra.mxu0 0.0
  %925 = vmatpush.msra.mxu0 0.0
  %926 = vmatpush.msra.mxu0 0.0
  %927 = vmatpush.msra.mxu0 0.0
  %928 = vmatpush.msra.mxu0 0.0
  %929 = vmatpush.msra.mxu0 0.0
  %930 = vmatpush.msra.mxu0 0.0
  %931 = vmatpush.msra.mxu0 0.0
  %932 = vmatpush.msra.mxu0 0.0
  %933 = vmatpush.msra.mxu0 %v440
  %934 = vmatmul.f32.gmra.mxu0 %v853
  %v935 = vpop.f32.mrf.mxu0
  %v936 = vadd.f32 0.0, %v935
  %937 = vdwg.mxu0
  %v938 = vadd.f32 %v289, %v936
  %v939 = vxor.u32 %v875, 2147483648
  %v940 = vmul.f32 %v939, 1.442695
  %v941 = vpow.pop %v940
  %v942 = vadd.f32 %v941, 1.0
  %v943 = vrcp.pop %v942
  %v944 = vmul.f32 %v942, %v943
  %v945 = vsub.f32 1.0, %v944
  %v946 = vmul.f32 %v943, %v945
  %v947 = vadd.f32 %v943, %v946
  %vm948 = vweird.f32 %v942
  %vm949 = vweird.f32 %v943
  %vm950 = vmor %vm948, %vm949
  %v951 = vsel %vm950, %v943, %v947
  %v952 = vand.u32 2147483647, %v942
  %vm953 = vcmp.eq.f32.partialorder %v952, 8.507059e+37
  %v954 = vand.u32 %v942, 2147483648
  %v955 = vor.u32 1.1754944e-38, %v954
  %v956 = vsel %vm953, %v955, %v951
  %v957 = vmul.f32 1.0, %v956
  %v958 = vxor.u32 %v896, 2147483648
  %v959 = vmul.f32 %v958, 1.442695
  %v960 = vpow.pop %v959
  %v961 = vadd.f32 %v960, 1.0
  %v962 = vrcp.pop %v961
  %v963 = vmul.f32 %v961, %v962
  %v964 = vsub.f32 1.0, %v963
  %v965 = vmul.f32 %v962, %v964
  %v966 = vadd.f32 %v962, %v965
  %vm967 = vweird.f32 %v961
  %vm968 = vweird.f32 %v962
  %vm969 = vmor %vm967, %vm968
  %v970 = vsel %vm969, %v962, %v966
  %v971 = vand.u32 2147483647, %v961
  %vm972 = vcmp.eq.f32.partialorder %v971, 8.507059e+37
  %v973 = vand.u32 %v961, 2147483648
  %v974 = vor.u32 1.1754944e-38, %v973
  %v975 = vsel %vm972, %v974, %v970
  %v976 = vmul.f32 1.0, %v975
  %v977 = vtanh.pop %v917
  %v978 = vxor.u32 %v938, 2147483648
  %v979 = vmul.f32 %v978, 1.442695
  %v980 = vpow.pop %v979
  %v981 = vadd.f32 %v980, 1.0
  %v982 = vrcp.pop %v981
  %v983 = vmul.f32 %v981, %v982
  %v984 = vsub.f32 1.0, %v983
  %v985 = vmul.f32 %v982, %v984
  %v986 = vadd.f32 %v982, %v985
  %vm987 = vweird.f32 %v981
  %vm988 = vweird.f32 %v982
  %vm989 = vmor %vm987, %vm988
  %v990 = vsel %vm989, %v982, %v986
  %v991 = vand.u32 2147483647, %v981
  %vm992 = vcmp.eq.f32.partialorder %v991, 8.507059e+37
  %v993 = vand.u32 %v981, 2147483648
  %v994 = vor.u32 1.1754944e-38, %v993
  %v995 = vsel %vm992, %v994, %v990
  %v996 = vmul.f32 1.0, %v995
  %v998 = vrot.slane %v848, 4
  %v1000 = vmul.f32 %v976, %v998
  %v1001 = vmul.f32 %v957, %v977
  %v1002 = vadd.f32 %v1000, %v1001
  %v1003 = vtanh.pop %v1002
  %v1004 = vmul.f32 %v996, %v1003
  %v1006 = vsel %vm120, %v1004, 0
  %1008 = vmatpush.msra.mxu0 0.0
  %1009 = vmatpush.msra.mxu0 0.0
  %1010 = vmatpush.msra.mxu0 0.0
  %1011 = vmatpush.msra.mxu0 0.0
  %1012 = vmatpush.msra.mxu0 0.0
  %1013 = vmatpush.msra.mxu0 0.0
  %1014 = vmatpush.msra.mxu0 0.0
  %1015 = vmatpush.msra.mxu0 0.0
  %1016 = vmatpush.msra.mxu0 0.0
  %1017 = vmatpush.msra.mxu0 0.0
  %1018 = vmatpush.msra.mxu0 0.0
  %1019 = vmatpush.msra.mxu0 0.0
  %1020 = vmatpush.msra.mxu0 0.0
  %1021 = vmatpush.msra.mxu0 0.0
  %1022 = vmatpush.msra.mxu0 0.0
  %1023 = vmatpush.msra.mxu0 %v359
  %1024 = vmatmul.f32.gmra.mxu0 %v1006
  %v1025 = vpop.f32.mrf.mxu0
  %v1026 = vadd.f32 0.0, %v1025
  %1027 = vdwg.mxu0
  %v1029 = vrot.slane %v1026, 4
  %v1031 = vadd.f32 %v190, %v1029
  %1032 = vmatpush.msra.mxu0 0.0
  %1033 = vmatpush.msra.mxu0 0.0
  %1034 = vmatpush.msra.mxu0 0.0
  %1035 = vmatpush.msra.mxu0 0.0
  %1036 = vmatpush.msra.mxu0 0.0
  %1037 = vmatpush.msra.mxu0 0.0
  %1038 = vmatpush.msra.mxu0 0.0
  %1039 = vmatpush.msra.mxu0 0.0
  %1040 = vmatpush.msra.mxu0 0.0
  %1041 = vmatpush.msra.mxu0 0.0
  %1042 = vmatpush.msra.mxu0 0.0
  %1043 = vmatpush.msra.mxu0 0.0
  %1044 = vmatpush.msra.mxu0 0.0
  %1045 = vmatpush.msra.mxu0 0.0
  %1046 = vmatpush.msra.mxu0 0.0
  %1047 = vmatpush.msra.mxu0 %v386
  %1048 = vmatmul.f32.gmra.mxu0 %v1006
  %v1049 = vpop.f32.mrf.mxu0
  %v1050 = vadd.f32 0.0, %v1049
  %1051 = vdwg.mxu0
  %v1053 = vrot.slane %v1050, 4
  %v1055 = vadd.f32 %v223, %v1053
  %1056 = vmatpush.msra.mxu0 0.0
  %1057 = vmatpush.msra.mxu0 0.0
  %1058 = vmatpush.msra.mxu0 0.0
  %1059 = vmatpush.msra.mxu0 0.0
  %1060 = vmatpush.msra.mxu0 0.0
  %1061 = vmatpush.msra.mxu0 0.0
  %1062 = vmatpush.msra.mxu0 0.0
  %1063 = vmatpush.msra.mxu0 0.0
  %1064 = vmatpush.msra.mxu0 0.0
  %1065 = vmatpush.msra.mxu0 0.0
  %1066 = vmatpush.msra.mxu0 0.0
  %1067 = vmatpush.msra.mxu0 0.0
  %1068 = vmatpush.msra.mxu0 0.0
  %1069 = vmatpush.msra.mxu0 0.0
  %1070 = vmatpush.msra.mxu0 0.0
  %1071 = vmatpush.msra.mxu0 %v413
  %1072 = vmatmul.f32.gmra.mxu0 %v1006
  %v1073 = vpop.f32.mrf.mxu0
  %v1074 = vadd.f32 0.0, %v1073
  %1075 = vdwg.mxu0
  %v1077 = vrot.slane %v1074, 4
  %v1079 = vadd.f32 %v256, %v1077
  %1080 = vmatpush.msra.mxu0 0.0
  %1081 = vmatpush.msra.mxu0 0.0
  %1082 = vmatpush.msra.mxu0 0.0
  %1083 = vmatpush.msra.mxu0 0.0
  %1084 = vmatpush.msra.mxu0 0.0
  %1085 = vmatpush.msra.mxu0 0.0
  %1086 = vmatpush.msra.mxu0 0.0
  %1087 = vmatpush.msra.mxu0 0.0
  %1088 = vmatpush.msra.mxu0 0.0
  %1089 = vmatpush.msra.mxu0 0.0
  %1090 = vmatpush.msra.mxu0 0.0
  %1091 = vmatpush.msra.mxu0 0.0
  %1092 = vmatpush.msra.mxu0 0.0
  %1093 = vmatpush.msra.mxu0 0.0
  %1094 = vmatpush.msra.mxu0 0.0
  %1095 = vmatpush.msra.mxu0 %v440
  %1096 = vmatmul.f32.gmra.mxu0 %v1006
  %v1097 = vpop.f32.mrf.mxu0
  %v1098 = vadd.f32 0.0, %v1097
  %1099 = vdwg.mxu0
  %v1101 = vrot.slane %v1098, 4
  %v1103 = vadd.f32 %v289, %v1101
  %v1104 = vxor.u32 %v1031, 2147483648
  %v1105 = vmul.f32 %v1104, 1.442695
  %v1106 = vpow.pop %v1105
  %v1107 = vadd.f32 %v1106, 1.0
  %v1108 = vrcp.pop %v1107
  %v1109 = vmul.f32 %v1107, %v1108
  %v1110 = vsub.f32 1.0, %v1109
  %v1111 = vmul.f32 %v1108, %v1110
  %v1112 = vadd.f32 %v1108, %v1111
  %vm1113 = vweird.f32 %v1107
  %vm1114 = vweird.f32 %v1108
  %vm1115 = vmor %vm1113, %vm1114
  %v1116 = vsel %vm1115, %v1108, %v1112
  %v1117 = vand.u32 2147483647, %v1107
  %vm1118 = vcmp.eq.f32.partialorder %v1117, 8.507059e+37
  %v1119 = vand.u32 %v1107, 2147483648
  %v1120 = vor.u32 1.1754944e-38, %v1119
  %v1121 = vsel %vm1118, %v1120, %v1116
  %v1122 = vmul.f32 1.0, %v1121
  %v1123 = vxor.u32 %v1055, 2147483648
  %v1124 = vmul.f32 %v1123, 1.442695
  %v1125 = vpow.pop %v1124
  %v1126 = vadd.f32 %v1125, 1.0
  %v1127 = vrcp.pop %v1126
  %v1128 = vmul.f32 %v1126, %v1127
  %v1129 = vsub.f32 1.0, %v1128
  %v1130 = vmul.f32 %v1127, %v1129
  %v1131 = vadd.f32 %v1127, %v1130
  %vm1132 = vweird.f32 %v1126
  %vm1133 = vweird.f32 %v1127
  %vm1134 = vmor %vm1132, %vm1133
  %v1135 = vsel %vm1134, %v1127, %v1131
  %v1136 = vand.u32 2147483647, %v1126
  %vm1137 = vcmp.eq.f32.partialorder %v1136, 8.507059e+37
  %v1138 = vand.u32 %v1126, 2147483648
  %v1139 = vor.u32 1.1754944e-38, %v1138
  %v1140 = vsel %vm1137, %v1139, %v1135
  %v1141 = vmul.f32 1.0, %v1140
  %v1142 = vtanh.pop %v1079
  %v1143 = vxor.u32 %v1103, 2147483648
  %v1144 = vmul.f32 %v1143, 1.442695
  %v1145 = vpow.pop %v1144
  %v1146 = vadd.f32 %v1145, 1.0
  %v1147 = vrcp.pop %v1146
  %v1148 = vmul.f32 %v1146, %v1147
  %v1149 = vsub.f32 1.0, %v1148
  %v1150 = vmul.f32 %v1147, %v1149
  %v1151 = vadd.f32 %v1147, %v1150
  %vm1152 = vweird.f32 %v1146
  %vm1153 = vweird.f32 %v1147
  %vm1154 = vmor %vm1152, %vm1153
  %v1155 = vsel %vm1154, %v1147, %v1151
  %v1156 = vand.u32 2147483647, %v1146
  %vm1157 = vcmp.eq.f32.partialorder %v1156, 8.507059e+37
  %v1158 = vand.u32 %v1146, 2147483648
  %v1159 = vor.u32 1.1754944e-38, %v1158
  %v1160 = vsel %vm1157, %v1159, %v1155
  %v1161 = vmul.f32 1.0, %v1160
  %v1163 = vrot.slane %v1002, 4
  %v1165 = vmul.f32 %v1141, %v1163
  %v1166 = vmul.f32 %v1122, %v1142
  %v1167 = vadd.f32 %v1165, %v1166
  %v1168 = vtanh.pop %v1167
  %v1169 = vmul.f32 %v1161, %v1168
  %1170 = vrot.lane.b32.xlu0 %v533, 6
  %v1171 = vpop.permute.xlu0 %1170
  %1173 = vrot.lane.b32.xlu0 %v685, 12
  %v1174 = vpop.permute.xlu0 %1173
  %1176 = vrot.lane.b32.xlu0 %v852, 18
  %v1177 = vpop.permute.xlu0 %1176
  %1179 = vrot.lane.b32.xlu0 %v1004, 24
  %v1180 = vpop.permute.xlu0 %1179
  %v1183 = vrot.slane %v1169, 4
  %1184 = vrot.lane.b32.xlu0 %v1183, 30
  %v1185 = vpop.permute.xlu0 %1184
  %v1187 = vsel %vm120, %v354, %v1171
  %vm1188 = vcmask 97280
  %v1189 = vsel %vm1188, %v1187, %v1174
  %vm1190 = vcmask 146432
  %v1191 = vsel %vm1190, %v1189, %v1177
  %vm1192 = vcmask 195584
  %v1193 = vsel %vm1192, %v1191, %v1180
  %vm1194 = vcmask 244736
  %v1195 = vsel %vm1194, %v1193, %v1185
  %vm1196 = vcmask 289792
  %1197 = vst.msk [vmem:[%s3] sm:$0xf] %vm1196, %v1195
  %v1198 = vld [vmem:[%s1 + $0x58] sm:$0xff]
  %v1199 = vld [vmem:[%s1 + $0x60] sm:$0xff]
  %v1200 = vld [vmem:[%s1 + $0x68] sm:$0xff]
  %v1201 = vld [vmem:[%s1 + $0x70] sm:$0xff]
  %v1202 = vld [vmem:[%s1 + $0x78] sm:$0xf]
  %v1204 = vrot.slane %v1195, 2
  %v1205 = vsel %vm26, %v1204, 0
  %v1208 = vsel %vm30, %v1202, 0
  %1210 = vmatpush.msra.mxu0 0.0
  %1211 = vmatpush.msra.mxu0 0.0
  %1212 = vmatpush.msra.mxu0 0.0
  %1213 = vmatpush.msra.mxu0 0.0
  %1214 = vmatpush.msra.mxu0 0.0
  %1215 = vmatpush.msra.mxu0 0.0
  %1216 = vmatpush.msra.mxu0 0.0
  %1217 = vmatpush.msra.mxu0 0.0
  %1218 = vmatpush.msra.mxu0 0.0
  %1219 = vmatpush.msra.mxu0 0.0
  %1220 = vmatpush.msra.mxu0 0.0
  %1221 = vmatpush.msra.mxu0 %v1208
  %1222 = vmatpush.msra.mxu0 %v1201
  %1223 = vmatpush.msra.mxu0 %v1200
  %1224 = vmatpush.msra.mxu0 %v1199
  %1225 = vmatpush.msra.mxu0 %v1198
  %1226 = vmatmul.f32.gmra.mxu0 %v1205
  %v1227 = vpop.f32.mrf.mxu0
  %v1228 = vadd.f32 %v145, %v1227
  %1229 = vdwg.mxu0
  %s1230 = sld [smem:[#allocation2]]
  %v1231 = vstv %s1230
  %v1232 = vadd.f32 %v1228, %v1231
  %v1233 = vxor.u32 %v1232, 2147483648
  %v1234 = vmul.f32 %v1233, 1.442695
  %v1235 = vpow.pop %v1234
  %v1236 = vadd.f32 %v1235, 1.0
  %v1237 = vrcp.pop %v1236
  %v1238 = vmul.f32 %v1236, %v1237
  %v1239 = vsub.f32 1.0, %v1238
  %v1240 = vmul.f32 %v1237, %v1239
  %v1241 = vadd.f32 %v1237, %v1240
  %vm1242 = vweird.f32 %v1236
  %vm1243 = vweird.f32 %v1237
  %vm1244 = vmor %vm1242, %vm1243
  %v1245 = vsel %vm1244, %v1237, %v1241
  %v1246 = vand.u32 2147483647, %v1236
  %vm1247 = vcmp.eq.f32.partialorder %v1246, 8.507059e+37
  %v1248 = vand.u32 %v1236, 2147483648
  %v1249 = vor.u32 1.1754944e-38, %v1248
  %v1250 = vsel %vm1247, %v1249, %v1245
  %v1251 = vmul.f32 1.0, %v1250
  %vm1252 = vcmask 41984
  %1253 = vst.msk [vmem:[%s3 + $0x8] sm:$0x3] %vm1252, %v1251
  %1254 = vst.msk [vmem:[%s3 + $0x10] sm:$0x3f] %vm56, %v80
  // Predicated region
  $region14: #{vignn_tcl_forward.1} parent=0 // pred_check
    _
  $region15: #{vignn_tcl_forward.1} parent=0 // pred_check_branch
    %1256 = sbr.rel (0) target = $region17
  $region16: #{vignn_tcl_forward.1} parent=0 // pred_region
    _
  $region17: #{vignn_tcl_forward.1} parent=0 // pred_fallthru
    _
  // Predicated region
  $region18: #{vignn_tcl_forward.1} parent=0 // pred_check
    _
  $region19: #{vignn_tcl_forward.1} parent=0 // pred_check_branch
    %1258 = sbr.rel (0) target = $region21
  $region20: #{vignn_tcl_forward.1} parent=0 // pred_region
    _
  $region21: #{vignn_tcl_forward.1} parent=0 // pred_fallthru
    _

</llo_original>
